<compile_context>
chip_gen: v7x
topology: tpu7x:2x2x1
jax: 0.10.0
libtpu: 0.0.40
codegen_flags: <defaults>
</compile_context>

<pallas_src>
import jax
import jax.numpy as jnp
from jax.experimental import pallas as pl
from jax.experimental.pallas import tpu as pltpu


# ---------------------------------------------------------------------------
# Kernel
# ---------------------------------------------------------------------------
def mnn_kernel(x_ref,
               w1, b1,            # fused layer 1: (D, 3H), (1, 3H)
               w2, b2,            # fused layer 2 (block-diag): (3H, 3H), (1, 3H)
               w3a, b3a,          # layer 3 of FCNN "a"  -> W   : (3H, O), (1, O)
               w3w, b3w,          # layer 3 of FCNN "w"  -> A   : (3H, O), (1, O)
               w3b, b3b,          # layer 3 of FCNN "b"  -> B   : (3H, O), (1, O)
               out_ref):          # (1, TB) lane-dense output row
    x = x_ref[...]                # (TB, D)
    x1 = x[:, 0:1]                # (TB, 1)  -- aligned, offset-0 lane slice

    # Fused hidden layers (the zeroed first row of w1 makes x1 contribute 0,
    # so this is exactly FCNN_*(x2) for all three networks stacked on lanes).
    h1 = jax.nn.sigmoid(
        jnp.dot(x, w1[...], preferred_element_type=jnp.float32) + b1[...])   # (TB, 3H)
    h2 = jax.nn.sigmoid(
        jnp.dot(h1, w2[...], preferred_element_type=jnp.float32) + b2[...])  # (TB, 3H)

    # Per-network output heads (block-zero-padded weights => no lane slicing).
    W_raw = jnp.dot(h2, w3a[...], preferred_element_type=jnp.float32) + b3a[...]  # (TB, O)
    A_raw = jnp.dot(h2, w3w[...], preferred_element_type=jnp.float32) + b3w[...]  # (TB, O)
    B_val = jnp.dot(h2, w3b[...], preferred_element_type=jnp.float32) + b3b[...]  # (TB, O)

    W = 10.0 * jax.nn.sigmoid(jnp.exp(W_raw))   # (TB, O)
    A = 10.0 * jax.nn.sigmoid(jnp.exp(A_raw))   # (TB, O)

    # sum(W*tanh(A*x1+B)) - sum(W*tanh(B)) == sum(W*(tanh(A*x1+B) - tanh(B)))
    Z = W * (jnp.tanh(A * x1 + B_val) - jnp.tanh(B_val))                      # (TB, O)

    # Row-sum AND sublane->lane transpose in one MXU op:
    #   y[0, j] = sum_k ones[0, k] * Z[j, k]
    ones_row = jnp.ones((1, Z.shape[1]), jnp.float32)
    y = jax.lax.dot_general(
        ones_row, Z,
        dimension_numbers=(((1,), (1,)), ((), ())),
        preferred_element_type=jnp.float32)                                   # (1, TB)
    out_ref[...] = y


# ---------------------------------------------------------------------------
# Host-side parameter fusion
# ---------------------------------------------------------------------------
def fuse_params(params, input_dim):
    """Fuse the three FCNNs into one wide/block-diagonal network."""
    nets = (params["a"], params["w"], params["b"])   # order: a -> W, w -> A, b -> B
    H = nets[0]["w1"].shape[1]
    O = nets[0]["w3"].shape[1]

    # Layer 1: (D, 3H), first row (the x1 column) is zero.
    w1 = jnp.zeros((input_dim, 3 * H), jnp.float32)
    w1 = w1.at[1:, :].set(jnp.concatenate([n["w1"] for n in nets], axis=1))
    b1 = jnp.concatenate([n["b1"] for n in nets], axis=1)                     # (1, 3H)

    # Layer 2: block-diagonal (3H, 3H).
    w2 = jnp.zeros((3 * H, 3 * H), jnp.float32)
    for k, n in enumerate(nets):
        w2 = w2.at[k * H:(k + 1) * H, k * H:(k + 1) * H].set(n["w2"])
    b2 = jnp.concatenate([n["b2"] for n in nets], axis=1)                     # (1, 3H)

    # Layer 3: three (3H, O) weights, each nonzero only in its own H-row block.
    def w3_full(k, w3):
        return jnp.zeros((3 * H, O), jnp.float32).at[k * H:(k + 1) * H, :].set(w3)

    w3a, b3a = w3_full(0, nets[0]["w3"]), nets[0]["b3"]
    w3w, b3w = w3_full(1, nets[1]["w3"]), nets[1]["b3"]
    w3b, b3b = w3_full(2, nets[2]["w3"]), nets[2]["b3"]

    return (w1, b1, w2, b2, w3a, b3a, w3w, b3w, w3b, b3b)


# ---------------------------------------------------------------------------
# Wrapper
# ---------------------------------------------------------------------------
def monotonic_nn_forward(x, params, *, batch_tile=512):
    """x: (B, input_dim) f32. params: dict of the 3 FCNNs' weights/biases."""
    B, D = x.shape
    assert batch_tile % 8 == 0

    grid_b = pl.cdiv(B, batch_tile)
    if grid_b > 1:
        # Lane-dense output blocks need a 128-multiple lane width.
        assert batch_tile % 128 == 0
    B_pad = grid_b * batch_tile
    if B_pad != B:
        x = jnp.pad(x, ((0, B_pad - B), (0, 0)))

    fused = fuse_params(params, D)

    def param_spec(arr):
        return pl.BlockSpec(arr.shape, lambda i: (0, 0))

    in_specs = [pl.BlockSpec((batch_tile, D), lambda i: (i, 0))]
    in_specs += [param_spec(p) for p in fused]

    out = pl.pallas_call(
        mnn_kernel,
        out_shape=jax.ShapeDtypeStruct((1, B_pad), jnp.float32),
        grid_spec=pltpu.PrefetchScalarGridSpec(
            num_scalar_prefetch=0,
            grid=(grid_b,),
            in_specs=in_specs,
            out_specs=pl.BlockSpec((1, batch_tile), lambda i: (0, i)),
        ),
        compiler_params=pltpu.CompilerParams(
            dimension_semantics=("parallel",)),
    )(x, *fused)

    return out.reshape(-1)[:B]   # (B,)


# ---------------------------------------------------------------------------
# Init + pure-JAX reference
# ---------------------------------------------------------------------------
def init_fcnn_params(key, in_dim, hidden_dim, out_dim):
    """Deterministic init mirroring nn.Linear default (U[-1/sqrt(fan_in), +])."""
    ks = jax.random.split(key, 6)

    def lin(kw, kb, fi, fo):
        bound = 1.0 / jnp.sqrt(jnp.float32(fi))
        w = jax.random.uniform(kw, (fi, fo), jnp.float32, -bound, bound)
        b = jax.random.uniform(kb, (1, fo), jnp.float32, -bound, bound)
        return w, b

    w1, b1 = lin(ks[0], ks[1], in_dim, hidden_dim)
    w2, b2 = lin(ks[2], ks[3], hidden_dim, hidden_dim)
    w3, b3 = lin(ks[4], ks[5], hidden_dim, out_dim)
    return {"w1": w1, "b1": b1, "w2": w2, "b2": b2, "w3": w3, "b3": b3}


def reference_forward(x, params):
    """Pure-JAX reference of the PyTorch forward."""
    x1 = x[:, 0:1]
    x2 = x[:, 1:]

    def fcnn(p):
        h1 = jax.nn.sigmoid(x2 @ p["w1"] + p["b1"])
        h2 = jax.nn.sigmoid(h1 @ p["w2"] + p["b2"])
        return h2 @ p["w3"] + p["b3"]

    W = 10.0 * jax.nn.sigmoid(jnp.exp(fcnn(params["a"])))
    A = 10.0 * jax.nn.sigmoid(jnp.exp(fcnn(params["w"])))
    Bv = fcnn(params["b"])
    return (jnp.sum(W * jnp.tanh(A * x1 + Bv), axis=1)
            - jnp.sum(W * jnp.tanh(Bv), axis=1))


if __name__ == "__main__":
    key = jax.random.PRNGKey(0)
    k_x, k_a, k_w, k_b = jax.random.split(key, 4)

    batch = 512          # small demo; production sizes amortize even better
    input_dim = 5        # FCNNs see input_dim - 1 = 4 features
    hidden_dim = 32
    output_dim = 8
    batch_tile = 128     # multiple of 128; grid=(4,) keeps both v7x TCs busy

    x = jax.random.normal(k_x, (batch, input_dim), jnp.float32)

    params = {
        "a": init_fcnn_params(k_a, input_dim - 1, hidden_dim, output_dim),
        "w": init_fcnn_params(k_w, input_dim - 1, hidden_dim, output_dim),
        "b": init_fcnn_params(k_b, input_dim - 1, hidden_dim, output_dim),
    }

    y = monotonic_nn_forward(x, params, batch_tile=batch_tile)
    y = jax.block_until_ready(y)

    y_ref = reference_forward(x, params)
    assert y.shape == (batch,)
    assert jnp.allclose(y, y_ref, atol=1e-4, rtol=1e-4), (
        float(jnp.max(jnp.abs(y - y_ref))))

    print("KERNEL_OK")
</pallas_src>

<mosaic_0001>
module attributes {stable_mosaic.version = 11 : i64} {
  func.func @mnn_kernel(%arg0: i32, %arg1: memref<128x5xf32, #tpu.memory_space<vmem>>, %arg2: memref<5x96xf32, #tpu.memory_space<vmem>>, %arg3: memref<1x96xf32, #tpu.memory_space<vmem>>, %arg4: memref<96x96xf32, #tpu.memory_space<vmem>>, %arg5: memref<1x96xf32, #tpu.memory_space<vmem>>, %arg6: memref<96x8xf32, #tpu.memory_space<vmem>>, %arg7: memref<1x8xf32, #tpu.memory_space<vmem>>, %arg8: memref<96x8xf32, #tpu.memory_space<vmem>>, %arg9: memref<1x8xf32, #tpu.memory_space<vmem>>, %arg10: memref<96x8xf32, #tpu.memory_space<vmem>>, %arg11: memref<1x8xf32, #tpu.memory_space<vmem>>, %arg12: memref<1x128xf32, #tpu.memory_space<vmem>>) attributes {dimension_semantics = [#tpu.dimension_semantics<parallel>], iteration_bounds = array<i64: 4>, scalar_prefetch = 0 : i64, scratch_operands = 0 : i64, tpu.core_type = #tpu.core_type<tc>, window_params = [{transform_indices = @transform_0, window_bounds = array<i64: 128, 5>}, {pipeline_mode = #tpu.pipeline_mode<synchronous>, transform_indices = @transform_1, window_bounds = array<i64: 5, 96>}, {pipeline_mode = #tpu.pipeline_mode<synchronous>, transform_indices = @transform_2, window_bounds = array<i64: 1, 96>}, {pipeline_mode = #tpu.pipeline_mode<synchronous>, transform_indices = @transform_3, window_bounds = array<i64: 96, 96>}, {pipeline_mode = #tpu.pipeline_mode<synchronous>, transform_indices = @transform_4, window_bounds = array<i64: 1, 96>}, {pipeline_mode = #tpu.pipeline_mode<synchronous>, transform_indices = @transform_5, window_bounds = array<i64: 96, 8>}, {pipeline_mode = #tpu.pipeline_mode<synchronous>, transform_indices = @transform_6, window_bounds = array<i64: 1, 8>}, {pipeline_mode = #tpu.pipeline_mode<synchronous>, transform_indices = @transform_7, window_bounds = array<i64: 96, 8>}, {pipeline_mode = #tpu.pipeline_mode<synchronous>, transform_indices = @transform_8, window_bounds = array<i64: 1, 8>}, {pipeline_mode = #tpu.pipeline_mode<synchronous>, transform_indices = @transform_9, window_bounds = array<i64: 96, 8>}, {pipeline_mode = #tpu.pipeline_mode<synchronous>, transform_indices = @transform_10, window_bounds = array<i64: 1, 8>}, {transform_indices = @transform_11, window_bounds = array<i64: 1, 128>}]} {
    %c0 = arith.constant 0 : index
    %c0_0 = arith.constant 0 : index
    %0 = vector.load %arg1[%c0, %c0_0] : memref<128x5xf32, #tpu.memory_space<vmem>>, vector<128x5xf32>
    %1 = vector.extract_strided_slice %0 {offsets = [0, 0], sizes = [128, 1], strides = [1, 1]} : vector<128x5xf32> to vector<128x1xf32>
    %c0_1 = arith.constant 0 : index
    %c0_2 = arith.constant 0 : index
    %2 = vector.load %arg2[%c0_1, %c0_2] : memref<5x96xf32, #tpu.memory_space<vmem>>, vector<5x96xf32>
    %cst = arith.constant dense<0.000000e+00> : vector<128x96xf32>
    %3 = tpu.matmul %0, %2, %cst {dimension_numbers = #tpu.dot_dimension_numbers<[1], [0], [0], [1], [0, 0, 1, 1], [], []>} : vector<128x5xf32>, vector<5x96xf32>, vector<128x96xf32> -> vector<128x96xf32>
    %c0_3 = arith.constant 0 : index
    %c0_4 = arith.constant 0 : index
    %4 = vector.load %arg3[%c0_3, %c0_4] : memref<1x96xf32, #tpu.memory_space<vmem>>, vector<1x96xf32>
    %5 = vector.broadcast %4 : vector<1x96xf32> to vector<128x96xf32>
    %6 = arith.addf %3, %5 : vector<128x96xf32>
    %7 = arith.negf %6 : vector<128x96xf32>
    %8 = math.exp %7 : vector<128x96xf32>
    %cst_5 = arith.constant 1.000000e+00 : f32
    %9 = vector.broadcast %cst_5 : f32 to vector<128x96xf32>
    %10 = arith.addf %9, %8 : vector<128x96xf32>
    %11 = arith.divf %9, %10 : vector<128x96xf32>
    %c0_6 = arith.constant 0 : index
    %c0_7 = arith.constant 0 : index
    %12 = vector.load %arg4[%c0_6, %c0_7] : memref<96x96xf32, #tpu.memory_space<vmem>>, vector<96x96xf32>
    %cst_8 = arith.constant dense<0.000000e+00> : vector<128x96xf32>
    %13 = tpu.matmul %11, %12, %cst_8 {dimension_numbers = #tpu.dot_dimension_numbers<[1], [0], [0], [1], [0, 0, 1, 1], [], []>} : vector<128x96xf32>, vector<96x96xf32>, vector<128x96xf32> -> vector<128x96xf32>
    %c0_9 = arith.constant 0 : index
    %c0_10 = arith.constant 0 : index
    %14 = vector.load %arg5[%c0_9, %c0_10] : memref<1x96xf32, #tpu.memory_space<vmem>>, vector<1x96xf32>
    %15 = vector.broadcast %14 : vector<1x96xf32> to vector<128x96xf32>
    %16 = arith.addf %13, %15 : vector<128x96xf32>
    %17 = arith.negf %16 : vector<128x96xf32>
    %18 = math.exp %17 : vector<128x96xf32>
    %cst_11 = arith.constant 1.000000e+00 : f32
    %19 = vector.broadcast %cst_11 : f32 to vector<128x96xf32>
    %20 = arith.addf %19, %18 : vector<128x96xf32>
    %21 = arith.divf %19, %20 : vector<128x96xf32>
    %c0_12 = arith.constant 0 : index
    %c0_13 = arith.constant 0 : index
    %22 = vector.load %arg6[%c0_12, %c0_13] : memref<96x8xf32, #tpu.memory_space<vmem>>, vector<96x8xf32>
    %cst_14 = arith.constant dense<0.000000e+00> : vector<128x8xf32>
    %23 = tpu.matmul %21, %22, %cst_14 {dimension_numbers = #tpu.dot_dimension_numbers<[1], [0], [0], [1], [0, 0, 1, 1], [], []>} : vector<128x96xf32>, vector<96x8xf32>, vector<128x8xf32> -> vector<128x8xf32>
    %c0_15 = arith.constant 0 : index
    %c0_16 = arith.constant 0 : index
    %24 = vector.load %arg7[%c0_15, %c0_16] : memref<1x8xf32, #tpu.memory_space<vmem>>, vector<1x8xf32>
    %25 = vector.broadcast %24 : vector<1x8xf32> to vector<128x8xf32>
    %26 = arith.addf %23, %25 : vector<128x8xf32>
    %c0_17 = arith.constant 0 : index
    %c0_18 = arith.constant 0 : index
    %27 = vector.load %arg8[%c0_17, %c0_18] : memref<96x8xf32, #tpu.memory_space<vmem>>, vector<96x8xf32>
    %cst_19 = arith.constant dense<0.000000e+00> : vector<128x8xf32>
    %28 = tpu.matmul %21, %27, %cst_19 {dimension_numbers = #tpu.dot_dimension_numbers<[1], [0], [0], [1], [0, 0, 1, 1], [], []>} : vector<128x96xf32>, vector<96x8xf32>, vector<128x8xf32> -> vector<128x8xf32>
    %c0_20 = arith.constant 0 : index
    %c0_21 = arith.constant 0 : index
    %29 = vector.load %arg9[%c0_20, %c0_21] : memref<1x8xf32, #tpu.memory_space<vmem>>, vector<1x8xf32>
    %30 = vector.broadcast %29 : vector<1x8xf32> to vector<128x8xf32>
    %31 = arith.addf %28, %30 : vector<128x8xf32>
    %c0_22 = arith.constant 0 : index
    %c0_23 = arith.constant 0 : index
    %32 = vector.load %arg10[%c0_22, %c0_23] : memref<96x8xf32, #tpu.memory_space<vmem>>, vector<96x8xf32>
    %cst_24 = arith.constant dense<0.000000e+00> : vector<128x8xf32>
    %33 = tpu.matmul %21, %32, %cst_24 {dimension_numbers = #tpu.dot_dimension_numbers<[1], [0], [0], [1], [0, 0, 1, 1], [], []>} : vector<128x96xf32>, vector<96x8xf32>, vector<128x8xf32> -> vector<128x8xf32>
    %c0_25 = arith.constant 0 : index
    %c0_26 = arith.constant 0 : index
    %34 = vector.load %arg11[%c0_25, %c0_26] : memref<1x8xf32, #tpu.memory_space<vmem>>, vector<1x8xf32>
    %35 = vector.broadcast %34 : vector<1x8xf32> to vector<128x8xf32>
    %36 = arith.addf %33, %35 : vector<128x8xf32>
    %37 = math.exp %26 : vector<128x8xf32>
    %38 = arith.negf %37 : vector<128x8xf32>
    %39 = math.exp %38 : vector<128x8xf32>
    %cst_27 = arith.constant 1.000000e+00 : f32
    %40 = vector.broadcast %cst_27 : f32 to vector<128x8xf32>
    %41 = arith.addf %40, %39 : vector<128x8xf32>
    %42 = arith.divf %40, %41 : vector<128x8xf32>
    %cst_28 = arith.constant 1.000000e+01 : f32
    %43 = vector.broadcast %cst_28 : f32 to vector<128x8xf32>
    %44 = arith.mulf %43, %42 : vector<128x8xf32>
    %45 = math.exp %31 : vector<128x8xf32>
    %46 = arith.negf %45 : vector<128x8xf32>
    %47 = math.exp %46 : vector<128x8xf32>
    %cst_29 = arith.constant 1.000000e+00 : f32
    %48 = vector.broadcast %cst_29 : f32 to vector<128x8xf32>
    %49 = arith.addf %48, %47 : vector<128x8xf32>
    %50 = arith.divf %48, %49 : vector<128x8xf32>
    %cst_30 = arith.constant 1.000000e+01 : f32
    %51 = vector.broadcast %cst_30 : f32 to vector<128x8xf32>
    %52 = arith.mulf %51, %50 : vector<128x8xf32>
    %53 = vector.broadcast %1 : vector<128x1xf32> to vector<128x8xf32>
    %54 = arith.mulf %52, %53 : vector<128x8xf32>
    %55 = arith.addf %54, %36 : vector<128x8xf32>
    %56 = math.tanh %55 : vector<128x8xf32>
    %57 = math.tanh %36 : vector<128x8xf32>
    %58 = arith.subf %56, %57 : vector<128x8xf32>
    %59 = arith.mulf %44, %58 : vector<128x8xf32>
    %cst_31 = arith.constant 1.000000e+00 : f32
    %60 = vector.broadcast %cst_31 : f32 to vector<1x8xf32>
    %cst_32 = arith.constant dense<0.000000e+00> : vector<1x128xf32>
    %61 = tpu.matmul %60, %59, %cst_32 {dimension_numbers = #tpu.dot_dimension_numbers<[1], [1], [0], [0], [0, 0, 1, 0], [], []>} : vector<1x8xf32>, vector<128x8xf32>, vector<1x128xf32> -> vector<1x128xf32>
    %c0_33 = arith.constant 0 : index
    %c0_34 = arith.constant 0 : index
    %62 = vector.load %arg12[%c0_33, %c0_34] : memref<1x128xf32, #tpu.memory_space<vmem>>, vector<1x128xf32>
    tpu.vector_store %arg12[%c0_33, %c0_34], %61 {strides = array<i32>} : memref<1x128xf32, #tpu.memory_space<vmem>>, vector<1x128xf32>,
    return
  }
  func.func @transform_0(%arg0: i32) -> (i32, i32) {
    %c0_i32 = arith.constant 0 : i32
    %c0_i32_0 = arith.constant 0 : i32
    return %arg0, %c0_i32 : i32, i32
  }
  func.func @transform_1(%arg0: i32) -> (i32, i32) {
    %c0_i32 = arith.constant 0 : i32
    %c0_i32_0 = arith.constant 0 : i32
    %c0_i32_1 = arith.constant 0 : i32
    return %c0_i32, %c0_i32_0 : i32, i32
  }
  func.func @transform_2(%arg0: i32) -> (i32, i32) {
    %c0_i32 = arith.constant 0 : i32
    %c0_i32_0 = arith.constant 0 : i32
    %c0_i32_1 = arith.constant 0 : i32
    return %c0_i32, %c0_i32_0 : i32, i32
  }
  func.func @transform_3(%arg0: i32) -> (i32, i32) {
    %c0_i32 = arith.constant 0 : i32
    %c0_i32_0 = arith.constant 0 : i32
    %c0_i32_1 = arith.constant 0 : i32
    return %c0_i32, %c0_i32_0 : i32, i32
  }
  func.func @transform_4(%arg0: i32) -> (i32, i32) {
    %c0_i32 = arith.constant 0 : i32
    %c0_i32_0 = arith.constant 0 : i32
    %c0_i32_1 = arith.constant 0 : i32
    return %c0_i32, %c0_i32_0 : i32, i32
  }
  func.func @transform_5(%arg0: i32) -> (i32, i32) {
    %c0_i32 = arith.constant 0 : i32
    %c0_i32_0 = arith.constant 0 : i32
    %c0_i32_1 = arith.constant 0 : i32
    return %c0_i32, %c0_i32_0 : i32, i32
  }
  func.func @transform_6(%arg0: i32) -> (i32, i32) {
    %c0_i32 = arith.constant 0 : i32
    %c0_i32_0 = arith.constant 0 : i32
    %c0_i32_1 = arith.constant 0 : i32
    return %c0_i32, %c0_i32_0 : i32, i32
  }
  func.func @transform_7(%arg0: i32) -> (i32, i32) {
    %c0_i32 = arith.constant 0 : i32
    %c0_i32_0 = arith.constant 0 : i32
    %c0_i32_1 = arith.constant 0 : i32
    return %c0_i32, %c0_i32_0 : i32, i32
  }
  func.func @transform_8(%arg0: i32) -> (i32, i32) {
    %c0_i32 = arith.constant 0 : i32
    %c0_i32_0 = arith.constant 0 : i32
    %c0_i32_1 = arith.constant 0 : i32
    return %c0_i32, %c0_i32_0 : i32, i32
  }
  func.func @transform_9(%arg0: i32) -> (i32, i32) {
    %c0_i32 = arith.constant 0 : i32
    %c0_i32_0 = arith.constant 0 : i32
    %c0_i32_1 = arith.constant 0 : i32
    return %c0_i32, %c0_i32_0 : i32, i32
  }
  func.func @transform_10(%arg0: i32) -> (i32, i32) {
    %c0_i32 = arith.constant 0 : i32
    %c0_i32_0 = arith.constant 0 : i32
    %c0_i32_1 = arith.constant 0 : i32
    return %c0_i32, %c0_i32_0 : i32, i32
  }
  func.func @transform_11(%arg0: i32) -> (i32, i32) {
    %c0_i32 = arith.constant 0 : i32
    %c0_i32_0 = arith.constant 0 : i32
    return %c0_i32, %arg0 : i32, i32
  }
}

</mosaic_0001>

<llo_original>
// kernel: tpu_custom_call.1
$region0: #{tpu_custom_call.1}
  #allocation0 [shape = 'u32[]', space=smem, size = 0x4, offset = 0x4, fixed_abs, tag = 'smem constant byte address 0x4 - core index']
  #allocation1 [shape = 'u32[144,128]{1,0:T(1,128)}', space=vmem, size = 0x12000, scoped, tag = 'internal scratch']
  %s0 = inlined_call_operand.vmem [shape: f32[512,5], index: 0, kind: input, shape index: {}]
  %s1 = inlined_call_operand.vmem [shape: f32[5,96], index: 1, kind: input, shape index: {}]
  %s2 = inlined_call_operand.vmem [shape: f32[1,96], index: 2, kind: input, shape index: {}]
  %s3 = inlined_call_operand.vmem [shape: f32[96,96], index: 3, kind: input, shape index: {}]
  %s4 = inlined_call_operand.vmem [shape: f32[1,96], index: 4, kind: input, shape index: {}]
  %s5 = inlined_call_operand.vmem [shape: f32[96,8], index: 5, kind: input, shape index: {}]
  %s6 = inlined_call_operand.vmem [shape: f32[1,8], index: 6, kind: input, shape index: {}]
  %s7 = inlined_call_operand.vmem [shape: f32[96,8], index: 7, kind: input, shape index: {}]
  %s8 = inlined_call_operand.vmem [shape: f32[1,8], index: 8, kind: input, shape index: {}]
  %s9 = inlined_call_operand.vmem [shape: f32[96,8], index: 9, kind: input, shape index: {}]
  %s10 = inlined_call_operand.vmem [shape: f32[1,8], index: 10, kind: input, shape index: {}]
  %s11 = inlined_call_operand.hbm [shape: f32[1,512], index: 11, kind: output, shape index: {}]
  %s12 = sld [smem:[#allocation0]]
  $region77: #{tpu_custom_call.1} parent=0
    _
  %s14 = ssub.s32 1, %s12
  %s15 = scalar_select 0, %s14, %s12
  $region1: #{tpu_custom_call.1} parent=0
    #allocation2 [shape = 'u8[1024]{0}', space=vmem, size = 0x400, scoped, tag = 'output window, operand 0']
    #allocation3 [shape = 's32[2]{0}', space=sflag, size = 0x8, scoped, tag = 'scoped memory for tpu_custom_call.1']
    %16 = vsyncpa [#allocation3], 0
    %s17 = scalar_lea.sflag [#allocation3], 1
    %18 = vsyncpa %s17, 0
    loop: start=0, step=1, limit=6
    $region2: #{tpu_custom_call.1} parent=1 // loop_pre_header
      _
    $region3: #{tpu_custom_call.1} parent=1 // loop_header
      %s20 = sphi 0, %s24
      %p21 = scmp.ge.s32.totalorder %s20, 6
      %s30 = sphi 0, %s32
      %s33 = sphi 0, %s30
      %s34 = sphi 0, %s33
      %s50 = sphi 0, %s34
      %s54 = sphi 0, %s54
      %s56 = sphi 0, %s54
      %s57 = sphi 0, %s56
      %s71 = sphi 0, %s57
      %s75 = sphi 0, %s75
      %s77 = sphi 0, %s75
      %s78 = sphi 0, %s77
      %s92 = sphi 0, %s78
      %s96 = sphi 0, %s96
      %s98 = sphi 0, %s96
      %s99 = sphi 0, %s98
      %s113 = sphi 0, %s99
      %s117 = sphi 0, %s117
      %s119 = sphi 0, %s117
      %s120 = sphi 0, %s119
      %s134 = sphi 0, %s120
      %s138 = sphi 0, %s138
      %s140 = sphi 0, %s138
      %s141 = sphi 0, %s140
      %s155 = sphi 0, %s141
      %s159 = sphi 0, %s159
      %s161 = sphi 0, %s159
      %s162 = sphi 0, %s161
      %s176 = sphi 0, %s162
      %s180 = sphi 0, %s180
      %s182 = sphi 0, %s180
      %s183 = sphi 0, %s182
      %s197 = sphi 0, %s183
      %s201 = sphi 0, %s201
      %s203 = sphi 0, %s201
      %s204 = sphi 0, %s203
      %s218 = sphi 0, %s204
      %s222 = sphi 0, %s222
      %s224 = sphi 0, %s222
      %s225 = sphi 0, %s224
      %s239 = sphi 0, %s225
      %s243 = sphi 0, %s243
      %s245 = sphi 0, %s243
      %s246 = sphi 0, %s245
      %s260 = sphi 0, %s246
      %s266 = sphi 0, %s268
      %s269 = sphi 0, %s266
      %s270 = sphi 0, %s269
      %s286 = sphi 0, %s270
    $region4: #{tpu_custom_call.1} parent=1 // loop_header_branch
      %23 = sbr.rel (%p21) target = $region8
    $region5: #{tpu_custom_call.1} parent=1 // loop_body
      %s25 = ssub.s32 %s20, 1
      %s26 = ssub.s32 %s20, 2
      %s27 = sadd.s32 %s20, 1
      %s28 = ssub.s32 %s20, %s27
      %p29 = scmp.eq.s32.totalorder %s28, 0
      %s31 = sadd.s32 %s30, 1
      %s32 = scalar_select %p29, %s30, %s31
      %p35 = pneg %p29
      %p36 = scmp.eq.s32.totalorder %s20, 3
      %p37 = por %p35, %p36
      %p38 = scmp.ne.s32.totalorder %s30, %s33
      %p39 = scmp.eq.s32.totalorder %s20, 0
      %p40 = por %p38, %p39
      %p41 = scmp.ne.s32.totalorder %s30, %s33
      %p42 = scmp.eq.s32.totalorder %s25, 3
      %p43 = por %p41, %p42
      %p44 = scmp.ne.s32.totalorder %s33, %s34
      %p45 = scmp.eq.s32.totalorder %s25, 0
      %p46 = por %p44, %p45
      %p47 = scmp.ne.s32.totalorder %s33, %s34
      %p48 = scmp.eq.s32.totalorder %s26, 3
      %p49 = por %p47, %p48
      %p51 = scmp.ne.s32.totalorder %s34, %s50
      %p52 = scmp.eq.s32.totalorder %s26, 0
      %p53 = por %p51, %p52
      %s55 = sadd.s32 %s54, 1
      %p58 = scmp.eq.s32.totalorder %s20, 3
      %p59 = scmp.ne.s32.totalorder %s54, %s56
      %p60 = scmp.eq.s32.totalorder %s20, 0
      %p61 = por %p59, %p60
      %p62 = scmp.ne.s32.totalorder %s54, %s56
      %p63 = scmp.eq.s32.totalorder %s25, 3
      %p64 = por %p62, %p63
      %p65 = scmp.ne.s32.totalorder %s56, %s57
      %p66 = scmp.eq.s32.totalorder %s25, 0
      %p67 = por %p65, %p66
      %p68 = scmp.ne.s32.totalorder %s56, %s57
      %p69 = scmp.eq.s32.totalorder %s26, 3
      %p70 = por %p68, %p69
      %p72 = scmp.ne.s32.totalorder %s57, %s71
      %p73 = scmp.eq.s32.totalorder %s26, 0
      %p74 = por %p72, %p73
      %s76 = sadd.s32 %s75, 1
      %p79 = scmp.eq.s32.totalorder %s20, 3
      %p80 = scmp.ne.s32.totalorder %s75, %s77
      %p81 = scmp.eq.s32.totalorder %s20, 0
      %p82 = por %p80, %p81
      %p83 = scmp.ne.s32.totalorder %s75, %s77
      %p84 = scmp.eq.s32.totalorder %s25, 3
      %p85 = por %p83, %p84
      %p86 = scmp.ne.s32.totalorder %s77, %s78
      %p87 = scmp.eq.s32.totalorder %s25, 0
      %p88 = por %p86, %p87
      %p89 = scmp.ne.s32.totalorder %s77, %s78
      %p90 = scmp.eq.s32.totalorder %s26, 3
      %p91 = por %p89, %p90
      %p93 = scmp.ne.s32.totalorder %s78, %s92
      %p94 = scmp.eq.s32.totalorder %s26, 0
      %p95 = por %p93, %p94
      %s97 = sadd.s32 %s96, 1
      %p100 = scmp.eq.s32.totalorder %s20, 3
      %p101 = scmp.ne.s32.totalorder %s96, %s98
      %p102 = scmp.eq.s32.totalorder %s20, 0
      %p103 = por %p101, %p102
      %p104 = scmp.ne.s32.totalorder %s96, %s98
      %p105 = scmp.eq.s32.totalorder %s25, 3
      %p106 = por %p104, %p105
      %p107 = scmp.ne.s32.totalorder %s98, %s99
      %p108 = scmp.eq.s32.totalorder %s25, 0
      %p109 = por %p107, %p108
      %p110 = scmp.ne.s32.totalorder %s98, %s99
      %p111 = scmp.eq.s32.totalorder %s26, 3
      %p112 = por %p110, %p111
      %p114 = scmp.ne.s32.totalorder %s99, %s113
      %p115 = scmp.eq.s32.totalorder %s26, 0
      %p116 = por %p114, %p115
      %s118 = sadd.s32 %s117, 1
      %p121 = scmp.eq.s32.totalorder %s20, 3
      %p122 = scmp.ne.s32.totalorder %s117, %s119
      %p123 = scmp.eq.s32.totalorder %s20, 0
      %p124 = por %p122, %p123
      %p125 = scmp.ne.s32.totalorder %s117, %s119
      %p126 = scmp.eq.s32.totalorder %s25, 3
      %p127 = por %p125, %p126
      %p128 = scmp.ne.s32.totalorder %s119, %s120
      %p129 = scmp.eq.s32.totalorder %s25, 0
      %p130 = por %p128, %p129
      %p131 = scmp.ne.s32.totalorder %s119, %s120
      %p132 = scmp.eq.s32.totalorder %s26, 3
      %p133 = por %p131, %p132
      %p135 = scmp.ne.s32.totalorder %s120, %s134
      %p136 = scmp.eq.s32.totalorder %s26, 0
      %p137 = por %p135, %p136
      %s139 = sadd.s32 %s138, 1
      %p142 = scmp.eq.s32.totalorder %s20, 3
      %p143 = scmp.ne.s32.totalorder %s138, %s140
      %p144 = scmp.eq.s32.totalorder %s20, 0
      %p145 = por %p143, %p144
      %p146 = scmp.ne.s32.totalorder %s138, %s140
      %p147 = scmp.eq.s32.totalorder %s25, 3
      %p148 = por %p146, %p147
      %p149 = scmp.ne.s32.totalorder %s140, %s141
      %p150 = scmp.eq.s32.totalorder %s25, 0
      %p151 = por %p149, %p150
      %p152 = scmp.ne.s32.totalorder %s140, %s141
      %p153 = scmp.eq.s32.totalorder %s26, 3
      %p154 = por %p152, %p153
      %p156 = scmp.ne.s32.totalorder %s141, %s155
      %p157 = scmp.eq.s32.totalorder %s26, 0
      %p158 = por %p156, %p157
      %s160 = sadd.s32 %s159, 1
      %p163 = scmp.eq.s32.totalorder %s20, 3
      %p164 = scmp.ne.s32.totalorder %s159, %s161
      %p165 = scmp.eq.s32.totalorder %s20, 0
      %p166 = por %p164, %p165
      %p167 = scmp.ne.s32.totalorder %s159, %s161
      %p168 = scmp.eq.s32.totalorder %s25, 3
      %p169 = por %p167, %p168
      %p170 = scmp.ne.s32.totalorder %s161, %s162
      %p171 = scmp.eq.s32.totalorder %s25, 0
      %p172 = por %p170, %p171
      %p173 = scmp.ne.s32.totalorder %s161, %s162
      %p174 = scmp.eq.s32.totalorder %s26, 3
      %p175 = por %p173, %p174
      %p177 = scmp.ne.s32.totalorder %s162, %s176
      %p178 = scmp.eq.s32.totalorder %s26, 0
      %p179 = por %p177, %p178
      %s181 = sadd.s32 %s180, 1
      %p184 = scmp.eq.s32.totalorder %s20, 3
      %p185 = scmp.ne.s32.totalorder %s180, %s182
      %p186 = scmp.eq.s32.totalorder %s20, 0
      %p187 = por %p185, %p186
      %p188 = scmp.ne.s32.totalorder %s180, %s182
      %p189 = scmp.eq.s32.totalorder %s25, 3
      %p190 = por %p188, %p189
      %p191 = scmp.ne.s32.totalorder %s182, %s183
      %p192 = scmp.eq.s32.totalorder %s25, 0
      %p193 = por %p191, %p192
      %p194 = scmp.ne.s32.totalorder %s182, %s183
      %p195 = scmp.eq.s32.totalorder %s26, 3
      %p196 = por %p194, %p195
      %p198 = scmp.ne.s32.totalorder %s183, %s197
      %p199 = scmp.eq.s32.totalorder %s26, 0
      %p200 = por %p198, %p199
      %s202 = sadd.s32 %s201, 1
      %p205 = scmp.eq.s32.totalorder %s20, 3
      %p206 = scmp.ne.s32.totalorder %s201, %s203
      %p207 = scmp.eq.s32.totalorder %s20, 0
      %p208 = por %p206, %p207
      %p209 = scmp.ne.s32.totalorder %s201, %s203
      %p210 = scmp.eq.s32.totalorder %s25, 3
      %p211 = por %p209, %p210
      %p212 = scmp.ne.s32.totalorder %s203, %s204
      %p213 = scmp.eq.s32.totalorder %s25, 0
      %p214 = por %p212, %p213
      %p215 = scmp.ne.s32.totalorder %s203, %s204
      %p216 = scmp.eq.s32.totalorder %s26, 3
      %p217 = por %p215, %p216
      %p219 = scmp.ne.s32.totalorder %s204, %s218
      %p220 = scmp.eq.s32.totalorder %s26, 0
      %p221 = por %p219, %p220
      %s223 = sadd.s32 %s222, 1
      %p226 = scmp.eq.s32.totalorder %s20, 3
      %p227 = scmp.ne.s32.totalorder %s222, %s224
      %p228 = scmp.eq.s32.totalorder %s20, 0
      %p229 = por %p227, %p228
      %p230 = scmp.ne.s32.totalorder %s222, %s224
      %p231 = scmp.eq.s32.totalorder %s25, 3
      %p232 = por %p230, %p231
      %p233 = scmp.ne.s32.totalorder %s224, %s225
      %p234 = scmp.eq.s32.totalorder %s25, 0
      %p235 = por %p233, %p234
      %p236 = scmp.ne.s32.totalorder %s224, %s225
      %p237 = scmp.eq.s32.totalorder %s26, 3
      %p238 = por %p236, %p237
      %p240 = scmp.ne.s32.totalorder %s225, %s239
      %p241 = scmp.eq.s32.totalorder %s26, 0
      %p242 = por %p240, %p241
      %s244 = sadd.s32 %s243, 1
      %p247 = scmp.eq.s32.totalorder %s20, 3
      %p248 = scmp.ne.s32.totalorder %s243, %s245
      %p249 = scmp.eq.s32.totalorder %s20, 0
      %p250 = por %p248, %p249
      %p251 = scmp.ne.s32.totalorder %s243, %s245
      %p252 = scmp.eq.s32.totalorder %s25, 3
      %p253 = por %p251, %p252
      %p254 = scmp.ne.s32.totalorder %s245, %s246
      %p255 = scmp.eq.s32.totalorder %s25, 0
      %p256 = por %p254, %p255
      %p257 = scmp.ne.s32.totalorder %s245, %s246
      %p258 = scmp.eq.s32.totalorder %s26, 3
      %p259 = por %p257, %p258
      %p261 = scmp.ne.s32.totalorder %s246, %s260
      %p262 = scmp.eq.s32.totalorder %s26, 0
      %p263 = por %p261, %p262
      %s264 = ssub.s32 %s20, %s27
      %p265 = scmp.eq.s32.totalorder %s264, 0
      %s267 = sadd.s32 %s266, 1
      %s268 = scalar_select %p265, %s266, %s267
      %p271 = pneg %p265
      %p272 = scmp.eq.s32.totalorder %s20, 3
      %p273 = por %p271, %p272
      %p274 = scmp.ne.s32.totalorder %s266, %s269
      %p275 = scmp.eq.s32.totalorder %s20, 0
      %p276 = por %p274, %p275
      %p277 = scmp.ne.s32.totalorder %s266, %s269
      %p278 = scmp.eq.s32.totalorder %s25, 3
      %p279 = por %p277, %p278
      %p280 = scmp.ne.s32.totalorder %s269, %s270
      %p281 = scmp.eq.s32.totalorder %s25, 0
      %p282 = por %p280, %p281
      %p283 = scmp.ne.s32.totalorder %s269, %s270
      %p284 = scmp.eq.s32.totalorder %s26, 3
      %p285 = por %p283, %p284
      %p287 = scmp.ne.s32.totalorder %s270, %s286
      %p288 = scmp.eq.s32.totalorder %s26, 0
      %p289 = por %p287, %p288
      %p290 = scmp.le.s32.totalorder 1, %s20
      %p291 = scmp.lt.s32.totalorder %s20, 5
      %p292 = pnand %p290, %p291
      %p293 = pneg %p292
      // Predicated region
      $region9: #{tpu_custom_call.1} parent=5 // pred_check
        _
      $region10: #{tpu_custom_call.1} parent=5 // pred_check_branch
        %295 = sbr.rel (%p292) target = $region12
      $region11: #{tpu_custom_call.1} parent=5 // pred_region
        %s296 = ssub.s32 %s20, 1
        // Predicated region
        $region13: #{tpu_custom_call.1} parent=11 // pred_check
          %p297 = pneg %p67
        $region14: #{tpu_custom_call.1} parent=11 // pred_check_branch
          %299 = sbr.rel (%p297) target = $region16
        $region15: #{tpu_custom_call.1} parent=11 // pred_region
          _
        $region16: #{tpu_custom_call.1} parent=11 // pred_fallthru
          _
        // Predicated region
        $region17: #{tpu_custom_call.1} parent=11 // pred_check
          %p300 = pneg %p88
        $region18: #{tpu_custom_call.1} parent=11 // pred_check_branch
          %302 = sbr.rel (%p300) target = $region20
        $region19: #{tpu_custom_call.1} parent=11 // pred_region
          _
        $region20: #{tpu_custom_call.1} parent=11 // pred_fallthru
          _
        // Predicated region
        $region21: #{tpu_custom_call.1} parent=11 // pred_check
          %p303 = pneg %p109
        $region22: #{tpu_custom_call.1} parent=11 // pred_check_branch
          %305 = sbr.rel (%p303) target = $region24
        $region23: #{tpu_custom_call.1} parent=11 // pred_region
          _
        $region24: #{tpu_custom_call.1} parent=11 // pred_fallthru
          _
        // Predicated region
        $region25: #{tpu_custom_call.1} parent=11 // pred_check
          %p306 = pneg %p130
        $region26: #{tpu_custom_call.1} parent=11 // pred_check_branch
          %308 = sbr.rel (%p306) target = $region28
        $region27: #{tpu_custom_call.1} parent=11 // pred_region
          _
        $region28: #{tpu_custom_call.1} parent=11 // pred_fallthru
          _
        // Predicated region
        $region29: #{tpu_custom_call.1} parent=11 // pred_check
          %p309 = pneg %p151
        $region30: #{tpu_custom_call.1} parent=11 // pred_check_branch
          %311 = sbr.rel (%p309) target = $region32
        $region31: #{tpu_custom_call.1} parent=11 // pred_region
          _
        $region32: #{tpu_custom_call.1} parent=11 // pred_fallthru
          _
        // Predicated region
        $region33: #{tpu_custom_call.1} parent=11 // pred_check
          %p312 = pneg %p172
        $region34: #{tpu_custom_call.1} parent=11 // pred_check_branch
          %314 = sbr.rel (%p312) target = $region36
        $region35: #{tpu_custom_call.1} parent=11 // pred_region
          _
        $region36: #{tpu_custom_call.1} parent=11 // pred_fallthru
          _
        // Predicated region
        $region37: #{tpu_custom_call.1} parent=11 // pred_check
          %p315 = pneg %p193
        $region38: #{tpu_custom_call.1} parent=11 // pred_check_branch
          %317 = sbr.rel (%p315) target = $region40
        $region39: #{tpu_custom_call.1} parent=11 // pred_region
          _
        $region40: #{tpu_custom_call.1} parent=11 // pred_fallthru
          _
        // Predicated region
        $region41: #{tpu_custom_call.1} parent=11 // pred_check
          %p318 = pneg %p214
        $region42: #{tpu_custom_call.1} parent=11 // pred_check_branch
          %320 = sbr.rel (%p318) target = $region44
        $region43: #{tpu_custom_call.1} parent=11 // pred_region
          _
        $region44: #{tpu_custom_call.1} parent=11 // pred_fallthru
          _
        // Predicated region
        $region45: #{tpu_custom_call.1} parent=11 // pred_check
          %p321 = pneg %p235
        $region46: #{tpu_custom_call.1} parent=11 // pred_check_branch
          %323 = sbr.rel (%p321) target = $region48
        $region47: #{tpu_custom_call.1} parent=11 // pred_region
          _
        $region48: #{tpu_custom_call.1} parent=11 // pred_fallthru
          _
        // Predicated region
        $region49: #{tpu_custom_call.1} parent=11 // pred_check
          %p324 = pneg %p256
        $region50: #{tpu_custom_call.1} parent=11 // pred_check_branch
          %326 = sbr.rel (%p324) target = $region52
        $region51: #{tpu_custom_call.1} parent=11 // pred_region
          _
        $region52: #{tpu_custom_call.1} parent=11 // pred_fallthru
          _
      $region12: #{tpu_custom_call.1} parent=5 // pred_fallthru
        _
      %p327 = scmp.lt.s32.totalorder %s20, 4
      // Predicated region
      $region53: #{tpu_custom_call.1} parent=5 // pred_check
        %p328 = pneg %p327
      $region54: #{tpu_custom_call.1} parent=5 // pred_check_branch
        %330 = sbr.rel (%p328) target = $region56
      $region55: #{tpu_custom_call.1} parent=5 // pred_region
        // Predicated region
        $region57: #{tpu_custom_call.1} parent=55 // pred_check
          %p331 = pneg %p40
        $region58: #{tpu_custom_call.1} parent=55 // pred_check_branch
          %333 = sbr.rel (%p331) target = $region60
        $region59: #{tpu_custom_call.1} parent=55 // pred_region
          %s334 = smul.u32 16, %s20
          %p335 = scmp.lt.s32.totalorder %s334, 63
          %s336 = scalar_select %p335, %s334, 63
          %s337 = smul.addr %s336, 8
          %s338 = scalar_lea.vmem %s0, %s337
          %s339 = smul.u32 16, %s20
        $region60: #{tpu_custom_call.1} parent=55 // pred_fallthru
          _
      $region56: #{tpu_custom_call.1} parent=5 // pred_fallthru
        _
      %p340 = scmp.le.s32.totalorder 1, %s20
      %p341 = scmp.lt.s32.totalorder %s20, 5
      %p342 = pnand %p340, %p341
      %p343 = pneg %p342
      // Predicated region
      $region61: #{tpu_custom_call.1} parent=5 // pred_check
        _
      $region62: #{tpu_custom_call.1} parent=5 // pred_check_branch
        %345 = sbr.rel (%p342) target = $region64
      $region63: #{tpu_custom_call.1} parent=5 // pred_region
        %s346 = ssub.s32 %s20, 1
        %s347 = smul.u32 16, %s25
        %p348 = scmp.lt.s32.totalorder %s347, 63
        %s349 = scalar_select %p348, %s347, 63
        %s350 = smul.addr %s349, 8
        %s351 = scalar_lea.vmem %s0, %s350
        %p352 = pneg %p46
        %p353 = pneg %p43
        %p354 = pneg %p67
        %p355 = pneg %p64
        %p356 = pneg %p88
        %p357 = pneg %p85
        %p358 = pneg %p109
        %p359 = pneg %p106
        %p360 = pneg %p130
        %p361 = pneg %p127
        %p362 = pneg %p151
        %p363 = pneg %p148
        %p364 = pneg %p172
        %p365 = pneg %p169
        %p366 = pneg %p193
        %p367 = pneg %p190
        %p368 = pneg %p214
        %p369 = pneg %p211
        %p370 = pneg %p235
        %p371 = pneg %p232
        %p372 = pneg %p256
        %p373 = pneg %p253
        %p374 = pneg %p282
        %p375 = pneg %p279
        %s376 = sand.u32 %s269, 1
        %s377 = scalar_lea.sflag [#allocation3], %s376
        %s378 = sand.u32 %s269, 1
        %s379 = scalar_lea.vmem [#allocation2], %s378
        %s380 = smul.u32 16, %s25
        %p381 = scmp.lt.s32.totalorder %s380, 63
        %s382 = scalar_select %p381, %s380, 63
        %s383 = smul.addr %s382, 8
        %s384 = scalar_lea.vmem %s0, %s383
        %s385 = smul.u32 16, %s25
        %v386 = vld [vmem:[%s384] sm:$0xff]
        %v387 = vld [vmem:[%s384 + $0x8] sm:$0xff]
        %v388 = vld [vmem:[%s384 + $0x10] sm:$0xff]
        %v389 = vld [vmem:[%s384 + $0x18] sm:$0xff]
        %v390 = vld [vmem:[%s384 + $0x20] sm:$0xff]
        %v391 = vld [vmem:[%s384 + $0x28] sm:$0xff]
        %v392 = vld [vmem:[%s384 + $0x30] sm:$0xff]
        %v393 = vld [vmem:[%s384 + $0x38] sm:$0xff]
        %v394 = vld [vmem:[%s384 + $0x40] sm:$0xff]
        %v395 = vld [vmem:[%s384 + $0x48] sm:$0xff]
        %v396 = vld [vmem:[%s384 + $0x50] sm:$0xff]
        %v397 = vld [vmem:[%s384 + $0x58] sm:$0xff]
        %v398 = vld [vmem:[%s384 + $0x60] sm:$0xff]
        %v399 = vld [vmem:[%s384 + $0x68] sm:$0xff]
        %v400 = vld [vmem:[%s384 + $0x70] sm:$0xff]
        %v401 = vld [vmem:[%s384 + $0x78] sm:$0xff]
        %v402 = vld [vmem:[%s1] sm:$0x1f]
        %v403 = vld [vmem:[%s2] sm:$0x1]
        %v405 = vlaneseq
        %v406 = vshrl.u32 %v405, 7
        %v407 = vsub.s32 0, %v406
        %v408 = vrot.slane %v403, %v407
        %vm410 = vcmask 39936
        %v412 = vsel %vm410, %v386, 0
        %v415 = vsel %vm410, %v387, 0
        %v418 = vsel %vm410, %v388, 0
        %v421 = vsel %vm410, %v389, 0
        %v424 = vsel %vm410, %v390, 0
        %v427 = vsel %vm410, %v391, 0
        %v430 = vsel %vm410, %v392, 0
        %v433 = vsel %vm410, %v393, 0
        %v436 = vsel %vm410, %v394, 0
        %v439 = vsel %vm410, %v395, 0
        %v442 = vsel %vm410, %v396, 0
        %v445 = vsel %vm410, %v397, 0
        %v448 = vsel %vm410, %v398, 0
        %v451 = vsel %vm410, %v399, 0
        %v454 = vsel %vm410, %v400, 0
        %v457 = vsel %vm410, %v401, 0
        %vm459 = vcmask 1044480
        %v461 = vsel %vm459, %v402, 0
        %463 = vmatprep.subr.mxu0 0.0
        %464 = vmatpush1.msra.mxu0 %v461
        %465 = vmatprep.subr.mxu0 0.0
        %466 = vmatpush1.msra.mxu0 0.0
        %467 = vmatprep.subr.mxu0 0.0
        %468 = vmatpush1.msra.mxu0 0.0
        %469 = vmatprep.subr.mxu0 0.0
        %470 = vmatpush1.msra.mxu0 0.0
        %471 = vmatprep.subr.mxu0 0.0
        %472 = vmatpush1.msra.mxu0 0.0
        %473 = vmatprep.subr.mxu0 0.0
        %474 = vmatpush1.msra.mxu0 0.0
        %475 = vmatprep.subr.mxu0 0.0
        %476 = vmatpush1.msra.mxu0 0.0
        %477 = vmatprep.subr.mxu0 0.0
        %478 = vmatpush1.msra.mxu0 0.0
        %479 = vmatprep.subr.mxu0 0.0
        %480 = vmatpush1.msra.mxu0 0.0
        %481 = vmatprep.subr.mxu0 0.0
        %482 = vmatpush1.msra.mxu0 0.0
        %483 = vmatprep.subr.mxu0 0.0
        %484 = vmatpush1.msra.mxu0 0.0
        %485 = vmatprep.subr.mxu0 0.0
        %486 = vmatpush1.msra.mxu0 0.0
        %487 = vmatprep.subr.mxu0 0.0
        %488 = vmatpush1.msra.mxu0 0.0
        %489 = vmatprep.subr.mxu0 0.0
        %490 = vmatpush1.msra.mxu0 0.0
        %491 = vmatprep.subr.mxu0 0.0
        %492 = vmatpush1.msra.mxu0 0.0
        %493 = vmatprep.subr.mxu0 0.0
        %494 = vmatpush1.msra.mxu0 0.0
        %495 = vmatprep.subr.mxu0 0.0
        %496 = vmatpush1.msra.mxu0 0.0
        %497 = vmatprep.subr.mxu0 0.0
        %498 = vmatpush1.msra.mxu0 0.0
        %499 = vmatprep.subr.mxu0 0.0
        %500 = vmatpush1.msra.mxu0 0.0
        %501 = vmatprep.subr.mxu0 0.0
        %502 = vmatpush1.msra.mxu0 0.0
        %503 = vmatprep.subr.mxu0 0.0
        %504 = vmatpush1.msra.mxu0 0.0
        %505 = vmatprep.subr.mxu0 0.0
        %506 = vmatpush1.msra.mxu0 0.0
        %507 = vmatprep.subr.mxu0 0.0
        %508 = vmatpush1.msra.mxu0 0.0
        %509 = vmatprep.subr.mxu0 0.0
        %510 = vmatpush1.msra.mxu0 0.0
        %511 = vmatprep.subr.mxu0 0.0
        %512 = vmatpush1.msra.mxu0 0.0
        %513 = vmatprep.subr.mxu0 0.0
        %514 = vmatpush1.msra.mxu0 0.0
        %515 = vmatprep.subr.mxu0 0.0
        %516 = vmatpush1.msra.mxu0 0.0
        %517 = vmatprep.subr.mxu0 0.0
        %518 = vmatpush1.msra.mxu0 0.0
        %519 = vmatprep.subr.mxu0 0.0
        %520 = vmatpush1.msra.mxu0 0.0
        %521 = vmatprep.subr.mxu0 0.0
        %522 = vmatpush1.msra.mxu0 0.0
        %523 = vmatprep.subr.mxu0 0.0
        %524 = vmatpush1.msra.mxu0 0.0
        %525 = vmatprep.subr.mxu0 0.0
        %526 = vmatpush1.msra.mxu0 0.0
        %527 = vmatprep.mubr.f32.mxu0 0.0
        %528 = vmatmul.mubr.f32.gmra.mrb[0].mxu0 %v412
        %v529 = vpop.f32.mrb[0].mxu0
        %v530 = vadd.f32 %v408, %v529
        %v531 = vpop.f32.mrb[0].mxu0
        %532 = vmatprep.mubr.f32.mxu0 0.0
        %533 = vmatmul.mubr.f32.gmra.mrb[0].mxu0 %v415
        %v534 = vpop.f32.mrb[0].mxu0
        %v535 = vadd.f32 %v408, %v534
        %v536 = vpop.f32.mrb[0].mxu0
        %537 = vmatprep.mubr.f32.mxu0 0.0
        %538 = vmatmul.mubr.f32.gmra.mrb[0].mxu0 %v418
        %v539 = vpop.f32.mrb[0].mxu0
        %v540 = vadd.f32 %v408, %v539
        %v541 = vpop.f32.mrb[0].mxu0
        %542 = vmatprep.mubr.f32.mxu0 0.0
        %543 = vmatmul.mubr.f32.gmra.mrb[0].mxu0 %v421
        %v544 = vpop.f32.mrb[0].mxu0
        %v545 = vadd.f32 %v408, %v544
        %v546 = vpop.f32.mrb[0].mxu0
        %547 = vmatprep.mubr.f32.mxu0 0.0
        %548 = vmatmul.mubr.f32.gmra.mrb[0].mxu0 %v424
        %v549 = vpop.f32.mrb[0].mxu0
        %v550 = vadd.f32 %v408, %v549
        %v551 = vpop.f32.mrb[0].mxu0
        %552 = vmatprep.mubr.f32.mxu0 0.0
        %553 = vmatmul.mubr.f32.gmra.mrb[0].mxu0 %v427
        %v554 = vpop.f32.mrb[0].mxu0
        %v555 = vadd.f32 %v408, %v554
        %v556 = vpop.f32.mrb[0].mxu0
        %557 = vmatprep.mubr.f32.mxu0 0.0
        %558 = vmatmul.mubr.f32.gmra.mrb[0].mxu0 %v430
        %v559 = vpop.f32.mrb[0].mxu0
        %v560 = vadd.f32 %v408, %v559
        %v561 = vpop.f32.mrb[0].mxu0
        %562 = vmatprep.mubr.f32.mxu0 0.0
        %563 = vmatmul.mubr.f32.gmra.mrb[0].mxu0 %v433
        %v564 = vpop.f32.mrb[0].mxu0
        %v565 = vadd.f32 %v408, %v564
        %v566 = vpop.f32.mrb[0].mxu0
        %567 = vmatprep.mubr.f32.mxu0 0.0
        %568 = vmatmul.mubr.f32.gmra.mrb[0].mxu0 %v436
        %v569 = vpop.f32.mrb[0].mxu0
        %v570 = vadd.f32 %v408, %v569
        %v571 = vpop.f32.mrb[0].mxu0
        %572 = vmatprep.mubr.f32.mxu0 0.0
        %573 = vmatmul.mubr.f32.gmra.mrb[0].mxu0 %v439
        %v574 = vpop.f32.mrb[0].mxu0
        %v575 = vadd.f32 %v408, %v574
        %v576 = vpop.f32.mrb[0].mxu0
        %577 = vmatprep.mubr.f32.mxu0 0.0
        %578 = vmatmul.mubr.f32.gmra.mrb[0].mxu0 %v442
        %v579 = vpop.f32.mrb[0].mxu0
        %v580 = vadd.f32 %v408, %v579
        %v581 = vpop.f32.mrb[0].mxu0
        %582 = vmatprep.mubr.f32.mxu0 0.0
        %583 = vmatmul.mubr.f32.gmra.mrb[0].mxu0 %v445
        %v584 = vpop.f32.mrb[0].mxu0
        %v585 = vadd.f32 %v408, %v584
        %v586 = vpop.f32.mrb[0].mxu0
        %587 = vmatprep.mubr.f32.mxu0 0.0
        %588 = vmatmul.mubr.f32.gmra.mrb[0].mxu0 %v448
        %v589 = vpop.f32.mrb[0].mxu0
        %v590 = vadd.f32 %v408, %v589
        %v591 = vpop.f32.mrb[0].mxu0
        %592 = vmatprep.mubr.f32.mxu0 0.0
        %593 = vmatmul.mubr.f32.gmra.mrb[0].mxu0 %v451
        %v594 = vpop.f32.mrb[0].mxu0
        %v595 = vadd.f32 %v408, %v594
        %v596 = vpop.f32.mrb[0].mxu0
        %597 = vmatprep.mubr.f32.mxu0 0.0
        %598 = vmatmul.mubr.f32.gmra.mrb[0].mxu0 %v454
        %v599 = vpop.f32.mrb[0].mxu0
        %v600 = vadd.f32 %v408, %v599
        %v601 = vpop.f32.mrb[0].mxu0
        %602 = vmatprep.mubr.f32.mxu0 0.0
        %603 = vmatmul.mubr.f32.gmra.mrb[0].mxu0 %v457
        %v604 = vpop.f32.mrb[0].mxu0
        %v605 = vadd.f32 %v408, %v604
        %v606 = vpop.f32.mrb[0].mxu0
        %607 = vdwg.mxu0
        %v608 = vxor.u32 %v530, 2147483648
        %v609 = vxor.u32 %v535, 2147483648
        %v610 = vxor.u32 %v540, 2147483648
        %v611 = vxor.u32 %v545, 2147483648
        %v612 = vxor.u32 %v550, 2147483648
        %v613 = vxor.u32 %v555, 2147483648
        %v614 = vxor.u32 %v560, 2147483648
        %v615 = vxor.u32 %v565, 2147483648
        %v616 = vxor.u32 %v570, 2147483648
        %v617 = vxor.u32 %v575, 2147483648
        %v618 = vxor.u32 %v580, 2147483648
        %v619 = vxor.u32 %v585, 2147483648
        %v620 = vxor.u32 %v590, 2147483648
        %v621 = vxor.u32 %v595, 2147483648
        %v622 = vxor.u32 %v600, 2147483648
        %v623 = vxor.u32 %v605, 2147483648
        %v624 = vmul.f32 %v608, 1.442695
        %v625 = vpow.pop %v624
        %v626 = vmul.f32 %v609, 1.442695
        %v627 = vpow.pop %v626
        %v628 = vmul.f32 %v610, 1.442695
        %v629 = vpow.pop %v628
        %v630 = vmul.f32 %v611, 1.442695
        %v631 = vpow.pop %v630
        %v632 = vmul.f32 %v612, 1.442695
        %v633 = vpow.pop %v632
        %v634 = vmul.f32 %v613, 1.442695
        %v635 = vpow.pop %v634
        %v636 = vmul.f32 %v614, 1.442695
        %v637 = vpow.pop %v636
        %v638 = vmul.f32 %v615, 1.442695
        %v639 = vpow.pop %v638
        %v640 = vmul.f32 %v616, 1.442695
        %v641 = vpow.pop %v640
        %v642 = vmul.f32 %v617, 1.442695
        %v643 = vpow.pop %v642
        %v644 = vmul.f32 %v618, 1.442695
        %v645 = vpow.pop %v644
        %v646 = vmul.f32 %v619, 1.442695
        %v647 = vpow.pop %v646
        %v648 = vmul.f32 %v620, 1.442695
        %v649 = vpow.pop %v648
        %v650 = vmul.f32 %v621, 1.442695
        %v651 = vpow.pop %v650
        %v652 = vmul.f32 %v622, 1.442695
        %v653 = vpow.pop %v652
        %v654 = vmul.f32 %v623, 1.442695
        %v655 = vpow.pop %v654
        %v656 = vadd.f32 %v625, 1.0
        %v657 = vadd.f32 %v627, 1.0
        %v658 = vadd.f32 %v629, 1.0
        %v659 = vadd.f32 %v631, 1.0
        %v660 = vadd.f32 %v633, 1.0
        %v661 = vadd.f32 %v635, 1.0
        %v662 = vadd.f32 %v637, 1.0
        %v663 = vadd.f32 %v639, 1.0
        %v664 = vadd.f32 %v641, 1.0
        %v665 = vadd.f32 %v643, 1.0
        %v666 = vadd.f32 %v645, 1.0
        %v667 = vadd.f32 %v647, 1.0
        %v668 = vadd.f32 %v649, 1.0
        %v669 = vadd.f32 %v651, 1.0
        %v670 = vadd.f32 %v653, 1.0
        %v671 = vadd.f32 %v655, 1.0
        %v672 = vrcp.pop %v656
        %v673 = vmul.f32 1.0, %v672
        %v674 = vrcp.pop %v657
        %v675 = vmul.f32 1.0, %v674
        %v676 = vrcp.pop %v658
        %v677 = vmul.f32 1.0, %v676
        %v678 = vrcp.pop %v659
        %v679 = vmul.f32 1.0, %v678
        %v680 = vrcp.pop %v660
        %v681 = vmul.f32 1.0, %v680
        %v682 = vrcp.pop %v661
        %v683 = vmul.f32 1.0, %v682
        %v684 = vrcp.pop %v662
        %v685 = vmul.f32 1.0, %v684
        %v686 = vrcp.pop %v663
        %v687 = vmul.f32 1.0, %v686
        %v688 = vrcp.pop %v664
        %v689 = vmul.f32 1.0, %v688
        %v690 = vrcp.pop %v665
        %v691 = vmul.f32 1.0, %v690
        %v692 = vrcp.pop %v666
        %v693 = vmul.f32 1.0, %v692
        %v694 = vrcp.pop %v667
        %v695 = vmul.f32 1.0, %v694
        %v696 = vrcp.pop %v668
        %v697 = vmul.f32 1.0, %v696
        %v698 = vrcp.pop %v669
        %v699 = vmul.f32 1.0, %v698
        %v700 = vrcp.pop %v670
        %v701 = vmul.f32 1.0, %v700
        %v702 = vrcp.pop %v671
        %v703 = vmul.f32 1.0, %v702
        %v704 = vld [vmem:[%s3] sm:$0xff]
        %v705 = vld [vmem:[%s3 + $0x8] sm:$0xff]
        %v706 = vld [vmem:[%s3 + $0x10] sm:$0xff]
        %v707 = vld [vmem:[%s3 + $0x18] sm:$0xff]
        %v708 = vld [vmem:[%s3 + $0x20] sm:$0xff]
        %v709 = vld [vmem:[%s3 + $0x28] sm:$0xff]
        %v710 = vld [vmem:[%s3 + $0x30] sm:$0xff]
        %v711 = vld [vmem:[%s3 + $0x38] sm:$0xff]
        %v712 = vld [vmem:[%s3 + $0x40] sm:$0xff]
        %v713 = vld [vmem:[%s3 + $0x48] sm:$0xff]
        %v714 = vld [vmem:[%s3 + $0x50] sm:$0xff]
        %v715 = vld [vmem:[%s3 + $0x58] sm:$0xff]
        %v716 = vld [vmem:[%s4] sm:$0x1]
        %v718 = vlaneseq
        %v719 = vshrl.u32 %v718, 7
        %v720 = vsub.s32 0, %v719
        %v721 = vrot.slane %v716, %v720
        %vm723 = vcmask 785408
        %v725 = vsel %vm723, %v673, 0
        %v728 = vsel %vm723, %v675, 0
        %v731 = vsel %vm723, %v677, 0
        %v734 = vsel %vm723, %v679, 0
        %v737 = vsel %vm723, %v681, 0
        %v740 = vsel %vm723, %v683, 0
        %v743 = vsel %vm723, %v685, 0
        %v746 = vsel %vm723, %v687, 0
        %v749 = vsel %vm723, %v689, 0
        %v752 = vsel %vm723, %v691, 0
        %v755 = vsel %vm723, %v693, 0
        %v758 = vsel %vm723, %v695, 0
        %v761 = vsel %vm723, %v697, 0
        %v764 = vsel %vm723, %v699, 0
        %v767 = vsel %vm723, %v701, 0
        %v770 = vsel %vm723, %v703, 0
        %772 = vmatprep.subr.mxu0 0.0
        %773 = vmatpush1.msra.mxu0 %v704
        %774 = vmatprep.subr.mxu0 0.0
        %775 = vmatpush1.msra.mxu0 %v705
        %776 = vmatprep.subr.mxu0 0.0
        %777 = vmatpush1.msra.mxu0 %v706
        %778 = vmatprep.subr.mxu0 0.0
        %779 = vmatpush1.msra.mxu0 %v707
        %780 = vmatprep.subr.mxu0 0.0
        %781 = vmatpush1.msra.mxu0 %v708
        %782 = vmatprep.subr.mxu0 0.0
        %783 = vmatpush1.msra.mxu0 %v709
        %784 = vmatprep.subr.mxu0 0.0
        %785 = vmatpush1.msra.mxu0 %v710
        %786 = vmatprep.subr.mxu0 0.0
        %787 = vmatpush1.msra.mxu0 %v711
        %788 = vmatprep.subr.mxu0 0.0
        %789 = vmatpush1.msra.mxu0 %v712
        %790 = vmatprep.subr.mxu0 0.0
        %791 = vmatpush1.msra.mxu0 %v713
        %792 = vmatprep.subr.mxu0 0.0
        %793 = vmatpush1.msra.mxu0 %v714
        %794 = vmatprep.subr.mxu0 0.0
        %795 = vmatpush1.msra.mxu0 %v715
        %796 = vmatprep.subr.mxu0 0.0
        %797 = vmatpush1.msra.mxu0 0.0
        %798 = vmatprep.subr.mxu0 0.0
        %799 = vmatpush1.msra.mxu0 0.0
        %800 = vmatprep.subr.mxu0 0.0
        %801 = vmatpush1.msra.mxu0 0.0
        %802 = vmatprep.subr.mxu0 0.0
        %803 = vmatpush1.msra.mxu0 0.0
        %804 = vmatprep.subr.mxu0 0.0
        %805 = vmatpush1.msra.mxu0 0.0
        %806 = vmatprep.subr.mxu0 0.0
        %807 = vmatpush1.msra.mxu0 0.0
        %808 = vmatprep.subr.mxu0 0.0
        %809 = vmatpush1.msra.mxu0 0.0
        %810 = vmatprep.subr.mxu0 0.0
        %811 = vmatpush1.msra.mxu0 0.0
        %812 = vmatprep.subr.mxu0 0.0
        %813 = vmatpush1.msra.mxu0 0.0
        %814 = vmatprep.subr.mxu0 0.0
        %815 = vmatpush1.msra.mxu0 0.0
        %816 = vmatprep.subr.mxu0 0.0
        %817 = vmatpush1.msra.mxu0 0.0
        %818 = vmatprep.subr.mxu0 0.0
        %819 = vmatpush1.msra.mxu0 0.0
        %820 = vmatprep.subr.mxu0 0.0
        %821 = vmatpush1.msra.mxu0 0.0
        %822 = vmatprep.subr.mxu0 0.0
        %823 = vmatpush1.msra.mxu0 0.0
        %824 = vmatprep.subr.mxu0 0.0
        %825 = vmatpush1.msra.mxu0 0.0
        %826 = vmatprep.subr.mxu0 0.0
        %827 = vmatpush1.msra.mxu0 0.0
        %828 = vmatprep.subr.mxu0 0.0
        %829 = vmatpush1.msra.mxu0 0.0
        %830 = vmatprep.subr.mxu0 0.0
        %831 = vmatpush1.msra.mxu0 0.0
        %832 = vmatprep.subr.mxu0 0.0
        %833 = vmatpush1.msra.mxu0 0.0
        %834 = vmatprep.subr.mxu0 0.0
        %835 = vmatpush1.msra.mxu0 0.0
        %836 = vmatprep.mubr.f32.mxu0 0.0
        %837 = vmatmul.mubr.f32.gmra.mrb[0].mxu0 %v725
        %v838 = vpop.f32.mrb[0].mxu0
        %v839 = vadd.f32 %v721, %v838
        %v840 = vpop.f32.mrb[0].mxu0
        %841 = vmatprep.mubr.f32.mxu0 0.0
        %842 = vmatmul.mubr.f32.gmra.mrb[0].mxu0 %v728
        %v843 = vpop.f32.mrb[0].mxu0
        %v844 = vadd.f32 %v721, %v843
        %v845 = vpop.f32.mrb[0].mxu0
        %846 = vmatprep.mubr.f32.mxu0 0.0
        %847 = vmatmul.mubr.f32.gmra.mrb[0].mxu0 %v731
        %v848 = vpop.f32.mrb[0].mxu0
        %v849 = vadd.f32 %v721, %v848
        %v850 = vpop.f32.mrb[0].mxu0
        %851 = vmatprep.mubr.f32.mxu0 0.0
        %852 = vmatmul.mubr.f32.gmra.mrb[0].mxu0 %v734
        %v853 = vpop.f32.mrb[0].mxu0
        %v854 = vadd.f32 %v721, %v853
        %v855 = vpop.f32.mrb[0].mxu0
        %856 = vmatprep.mubr.f32.mxu0 0.0
        %857 = vmatmul.mubr.f32.gmra.mrb[0].mxu0 %v737
        %v858 = vpop.f32.mrb[0].mxu0
        %v859 = vadd.f32 %v721, %v858
        %v860 = vpop.f32.mrb[0].mxu0
        %861 = vmatprep.mubr.f32.mxu0 0.0
        %862 = vmatmul.mubr.f32.gmra.mrb[0].mxu0 %v740
        %v863 = vpop.f32.mrb[0].mxu0
        %v864 = vadd.f32 %v721, %v863
        %v865 = vpop.f32.mrb[0].mxu0
        %866 = vmatprep.mubr.f32.mxu0 0.0
        %867 = vmatmul.mubr.f32.gmra.mrb[0].mxu0 %v743
        %v868 = vpop.f32.mrb[0].mxu0
        %v869 = vadd.f32 %v721, %v868
        %v870 = vpop.f32.mrb[0].mxu0
        %871 = vmatprep.mubr.f32.mxu0 0.0
        %872 = vmatmul.mubr.f32.gmra.mrb[0].mxu0 %v746
        %v873 = vpop.f32.mrb[0].mxu0
        %v874 = vadd.f32 %v721, %v873
        %v875 = vpop.f32.mrb[0].mxu0
        %876 = vmatprep.mubr.f32.mxu0 0.0
        %877 = vmatmul.mubr.f32.gmra.mrb[0].mxu0 %v749
        %v878 = vpop.f32.mrb[0].mxu0
        %v879 = vadd.f32 %v721, %v878
        %v880 = vpop.f32.mrb[0].mxu0
        %881 = vmatprep.mubr.f32.mxu0 0.0
        %882 = vmatmul.mubr.f32.gmra.mrb[0].mxu0 %v752
        %v883 = vpop.f32.mrb[0].mxu0
        %v884 = vadd.f32 %v721, %v883
        %v885 = vpop.f32.mrb[0].mxu0
        %886 = vmatprep.mubr.f32.mxu0 0.0
        %887 = vmatmul.mubr.f32.gmra.mrb[0].mxu0 %v755
        %v888 = vpop.f32.mrb[0].mxu0
        %v889 = vadd.f32 %v721, %v888
        %v890 = vpop.f32.mrb[0].mxu0
        %891 = vmatprep.mubr.f32.mxu0 0.0
        %892 = vmatmul.mubr.f32.gmra.mrb[0].mxu0 %v758
        %v893 = vpop.f32.mrb[0].mxu0
        %v894 = vadd.f32 %v721, %v893
        %v895 = vpop.f32.mrb[0].mxu0
        %896 = vmatprep.mubr.f32.mxu0 0.0
        %897 = vmatmul.mubr.f32.gmra.mrb[0].mxu0 %v761
        %v898 = vpop.f32.mrb[0].mxu0
        %v899 = vadd.f32 %v721, %v898
        %v900 = vpop.f32.mrb[0].mxu0
        %901 = vmatprep.mubr.f32.mxu0 0.0
        %902 = vmatmul.mubr.f32.gmra.mrb[0].mxu0 %v764
        %v903 = vpop.f32.mrb[0].mxu0
        %v904 = vadd.f32 %v721, %v903
        %v905 = vpop.f32.mrb[0].mxu0
        %906 = vmatprep.mubr.f32.mxu0 0.0
        %907 = vmatmul.mubr.f32.gmra.mrb[0].mxu0 %v767
        %v908 = vpop.f32.mrb[0].mxu0
        %v909 = vadd.f32 %v721, %v908
        %v910 = vpop.f32.mrb[0].mxu0
        %911 = vmatprep.mubr.f32.mxu0 0.0
        %912 = vmatmul.mubr.f32.gmra.mrb[0].mxu0 %v770
        %v913 = vpop.f32.mrb[0].mxu0
        %v914 = vadd.f32 %v721, %v913
        %v915 = vpop.f32.mrb[0].mxu0
        %916 = vdwg.mxu0
        %v917 = vxor.u32 %v839, 2147483648
        %v918 = vxor.u32 %v844, 2147483648
        %v919 = vxor.u32 %v849, 2147483648
        %v920 = vxor.u32 %v854, 2147483648
        %v921 = vxor.u32 %v859, 2147483648
        %v922 = vxor.u32 %v864, 2147483648
        %v923 = vxor.u32 %v869, 2147483648
        %v924 = vxor.u32 %v874, 2147483648
        %v925 = vxor.u32 %v879, 2147483648
        %v926 = vxor.u32 %v884, 2147483648
        %v927 = vxor.u32 %v889, 2147483648
        %v928 = vxor.u32 %v894, 2147483648
        %v929 = vxor.u32 %v899, 2147483648
        %v930 = vxor.u32 %v904, 2147483648
        %v931 = vxor.u32 %v909, 2147483648
        %v932 = vxor.u32 %v914, 2147483648
        %v933 = vmul.f32 %v917, 1.442695
        %v934 = vpow.pop %v933
        %v935 = vmul.f32 %v918, 1.442695
        %v936 = vpow.pop %v935
        %v937 = vmul.f32 %v919, 1.442695
        %v938 = vpow.pop %v937
        %v939 = vmul.f32 %v920, 1.442695
        %v940 = vpow.pop %v939
        %v941 = vmul.f32 %v921, 1.442695
        %v942 = vpow.pop %v941
        %v943 = vmul.f32 %v922, 1.442695
        %v944 = vpow.pop %v943
        %v945 = vmul.f32 %v923, 1.442695
        %v946 = vpow.pop %v945
        %v947 = vmul.f32 %v924, 1.442695
        %v948 = vpow.pop %v947
        %v949 = vmul.f32 %v925, 1.442695
        %v950 = vpow.pop %v949
        %v951 = vmul.f32 %v926, 1.442695
        %v952 = vpow.pop %v951
        %v953 = vmul.f32 %v927, 1.442695
        %v954 = vpow.pop %v953
        %v955 = vmul.f32 %v928, 1.442695
        %v956 = vpow.pop %v955
        %v957 = vmul.f32 %v929, 1.442695
        %v958 = vpow.pop %v957
        %v959 = vmul.f32 %v930, 1.442695
        %v960 = vpow.pop %v959
        %v961 = vmul.f32 %v931, 1.442695
        %v962 = vpow.pop %v961
        %v963 = vmul.f32 %v932, 1.442695
        %v964 = vpow.pop %v963
        %v965 = vadd.f32 %v934, 1.0
        %v966 = vadd.f32 %v936, 1.0
        %v967 = vadd.f32 %v938, 1.0
        %v968 = vadd.f32 %v940, 1.0
        %v969 = vadd.f32 %v942, 1.0
        %v970 = vadd.f32 %v944, 1.0
        %v971 = vadd.f32 %v946, 1.0
        %v972 = vadd.f32 %v948, 1.0
        %v973 = vadd.f32 %v950, 1.0
        %v974 = vadd.f32 %v952, 1.0
        %v975 = vadd.f32 %v954, 1.0
        %v976 = vadd.f32 %v956, 1.0
        %v977 = vadd.f32 %v958, 1.0
        %v978 = vadd.f32 %v960, 1.0
        %v979 = vadd.f32 %v962, 1.0
        %v980 = vadd.f32 %v964, 1.0
        %v981 = vrcp.pop %v965
        %v982 = vmul.f32 1.0, %v981
        %v983 = vrcp.pop %v966
        %v984 = vmul.f32 1.0, %v983
        %v985 = vrcp.pop %v967
        %v986 = vmul.f32 1.0, %v985
        %v987 = vrcp.pop %v968
        %v988 = vmul.f32 1.0, %v987
        %v989 = vrcp.pop %v969
        %v990 = vmul.f32 1.0, %v989
        %v991 = vrcp.pop %v970
        %v992 = vmul.f32 1.0, %v991
        %v993 = vrcp.pop %v971
        %v994 = vmul.f32 1.0, %v993
        %v995 = vrcp.pop %v972
        %v996 = vmul.f32 1.0, %v995
        %v997 = vrcp.pop %v973
        %v998 = vmul.f32 1.0, %v997
        %v999 = vrcp.pop %v974
        %v1000 = vmul.f32 1.0, %v999
        %v1001 = vrcp.pop %v975
        %v1002 = vmul.f32 1.0, %v1001
        %v1003 = vrcp.pop %v976
        %v1004 = vmul.f32 1.0, %v1003
        %v1005 = vrcp.pop %v977
        %v1006 = vmul.f32 1.0, %v1005
        %v1007 = vrcp.pop %v978
        %v1008 = vmul.f32 1.0, %v1007
        %v1009 = vrcp.pop %v979
        %v1010 = vmul.f32 1.0, %v1009
        %v1011 = vrcp.pop %v980
        %v1012 = vmul.f32 1.0, %v1011
        %v1013 = vld [vmem:[%s5] sm:$0xff]
        %v1014 = vld [vmem:[%s5 + $0x8] sm:$0xff]
        %v1015 = vld [vmem:[%s5 + $0x10] sm:$0xff]
        %v1016 = vld [vmem:[%s5 + $0x18] sm:$0xff]
        %v1017 = vld [vmem:[%s5 + $0x20] sm:$0xff]
        %v1018 = vld [vmem:[%s5 + $0x28] sm:$0xff]
        %v1019 = vld [vmem:[%s5 + $0x30] sm:$0xff]
        %v1020 = vld [vmem:[%s5 + $0x38] sm:$0xff]
        %v1021 = vld [vmem:[%s5 + $0x40] sm:$0xff]
        %v1022 = vld [vmem:[%s5 + $0x48] sm:$0xff]
        %v1023 = vld [vmem:[%s5 + $0x50] sm:$0xff]
        %v1024 = vld [vmem:[%s5 + $0x58] sm:$0xff]
        %v1025 = vld [vmem:[%s6] sm:$0x1]
        %v1027 = vlaneseq
        %v1028 = vshrl.u32 %v1027, 7
        %v1029 = vsub.s32 0, %v1028
        %v1030 = vrot.slane %v1025, %v1029
        %v1033 = vsel %vm723, %v982, 0
        %v1036 = vsel %vm723, %v984, 0
        %v1039 = vsel %vm723, %v986, 0
        %v1042 = vsel %vm723, %v988, 0
        %v1045 = vsel %vm723, %v990, 0
        %v1048 = vsel %vm723, %v992, 0
        %v1051 = vsel %vm723, %v994, 0
        %v1054 = vsel %vm723, %v996, 0
        %v1057 = vsel %vm723, %v998, 0
        %v1060 = vsel %vm723, %v1000, 0
        %v1063 = vsel %vm723, %v1002, 0
        %v1066 = vsel %vm723, %v1004, 0
        %v1069 = vsel %vm723, %v1006, 0
        %v1072 = vsel %vm723, %v1008, 0
        %v1075 = vsel %vm723, %v1010, 0
        %v1078 = vsel %vm723, %v1012, 0
        %1080 = vmatprep.subr.mxu0 0.0
        %1081 = vmatpush1.msra.mxu0 %v1013
        %1082 = vmatprep.subr.mxu0 0.0
        %1083 = vmatpush1.msra.mxu0 %v1014
        %1084 = vmatprep.subr.mxu0 0.0
        %1085 = vmatpush1.msra.mxu0 %v1015
        %1086 = vmatprep.subr.mxu0 0.0
        %1087 = vmatpush1.msra.mxu0 %v1016
        %1088 = vmatprep.subr.mxu0 0.0
        %1089 = vmatpush1.msra.mxu0 %v1017
        %1090 = vmatprep.subr.mxu0 0.0
        %1091 = vmatpush1.msra.mxu0 %v1018
        %1092 = vmatprep.subr.mxu0 0.0
        %1093 = vmatpush1.msra.mxu0 %v1019
        %1094 = vmatprep.subr.mxu0 0.0
        %1095 = vmatpush1.msra.mxu0 %v1020
        %1096 = vmatprep.subr.mxu0 0.0
        %1097 = vmatpush1.msra.mxu0 %v1021
        %1098 = vmatprep.subr.mxu0 0.0
        %1099 = vmatpush1.msra.mxu0 %v1022
        %1100 = vmatprep.subr.mxu0 0.0
        %1101 = vmatpush1.msra.mxu0 %v1023
        %1102 = vmatprep.subr.mxu0 0.0
        %1103 = vmatpush1.msra.mxu0 %v1024
        %1104 = vmatprep.subr.mxu0 0.0
        %1105 = vmatpush1.msra.mxu0 0.0
        %1106 = vmatprep.subr.mxu0 0.0
        %1107 = vmatpush1.msra.mxu0 0.0
        %1108 = vmatprep.subr.mxu0 0.0
        %1109 = vmatpush1.msra.mxu0 0.0
        %1110 = vmatprep.subr.mxu0 0.0
        %1111 = vmatpush1.msra.mxu0 0.0
        %1112 = vmatprep.subr.mxu0 0.0
        %1113 = vmatpush1.msra.mxu0 0.0
        %1114 = vmatprep.subr.mxu0 0.0
        %1115 = vmatpush1.msra.mxu0 0.0
        %1116 = vmatprep.subr.mxu0 0.0
        %1117 = vmatpush1.msra.mxu0 0.0
        %1118 = vmatprep.subr.mxu0 0.0
        %1119 = vmatpush1.msra.mxu0 0.0
        %1120 = vmatprep.subr.mxu0 0.0
        %1121 = vmatpush1.msra.mxu0 0.0
        %1122 = vmatprep.subr.mxu0 0.0
        %1123 = vmatpush1.msra.mxu0 0.0
        %1124 = vmatprep.subr.mxu0 0.0
        %1125 = vmatpush1.msra.mxu0 0.0
        %1126 = vmatprep.subr.mxu0 0.0
        %1127 = vmatpush1.msra.mxu0 0.0
        %1128 = vmatprep.subr.mxu0 0.0
        %1129 = vmatpush1.msra.mxu0 0.0
        %1130 = vmatprep.subr.mxu0 0.0
        %1131 = vmatpush1.msra.mxu0 0.0
        %1132 = vmatprep.subr.mxu0 0.0
        %1133 = vmatpush1.msra.mxu0 0.0
        %1134 = vmatprep.subr.mxu0 0.0
        %1135 = vmatpush1.msra.mxu0 0.0
        %1136 = vmatprep.subr.mxu0 0.0
        %1137 = vmatpush1.msra.mxu0 0.0
        %1138 = vmatprep.subr.mxu0 0.0
        %1139 = vmatpush1.msra.mxu0 0.0
        %1140 = vmatprep.subr.mxu0 0.0
        %1141 = vmatpush1.msra.mxu0 0.0
        %1142 = vmatprep.subr.mxu0 0.0
        %1143 = vmatpush1.msra.mxu0 0.0
        %1144 = vmatprep.mubr.f32.mxu0 0.0
        %1145 = vmatmul.mubr.f32.gmra.mrb[0].mxu0 %v1033
        %v1146 = vpop.f32.mrb[0].mxu0
        %v1147 = vadd.f32 %v1030, %v1146
        %v1148 = vpop.f32.mrb[0].mxu0
        %1149 = vmatprep.mubr.f32.mxu0 0.0
        %1150 = vmatmul.mubr.f32.gmra.mrb[0].mxu0 %v1036
        %v1151 = vpop.f32.mrb[0].mxu0
        %v1152 = vadd.f32 %v1030, %v1151
        %v1153 = vpop.f32.mrb[0].mxu0
        %1154 = vmatprep.mubr.f32.mxu0 0.0
        %1155 = vmatmul.mubr.f32.gmra.mrb[0].mxu0 %v1039
        %v1156 = vpop.f32.mrb[0].mxu0
        %v1157 = vadd.f32 %v1030, %v1156
        %v1158 = vpop.f32.mrb[0].mxu0
        %1159 = vmatprep.mubr.f32.mxu0 0.0
        %1160 = vmatmul.mubr.f32.gmra.mrb[0].mxu0 %v1042
        %v1161 = vpop.f32.mrb[0].mxu0
        %v1162 = vadd.f32 %v1030, %v1161
        %v1163 = vpop.f32.mrb[0].mxu0
        %1164 = vmatprep.mubr.f32.mxu0 0.0
        %1165 = vmatmul.mubr.f32.gmra.mrb[0].mxu0 %v1045
        %v1166 = vpop.f32.mrb[0].mxu0
        %v1167 = vadd.f32 %v1030, %v1166
        %v1168 = vpop.f32.mrb[0].mxu0
        %1169 = vmatprep.mubr.f32.mxu0 0.0
        %1170 = vmatmul.mubr.f32.gmra.mrb[0].mxu0 %v1048
        %v1171 = vpop.f32.mrb[0].mxu0
        %v1172 = vadd.f32 %v1030, %v1171
        %v1173 = vpop.f32.mrb[0].mxu0
        %1174 = vmatprep.mubr.f32.mxu0 0.0
        %1175 = vmatmul.mubr.f32.gmra.mrb[0].mxu0 %v1051
        %v1176 = vpop.f32.mrb[0].mxu0
        %v1177 = vadd.f32 %v1030, %v1176
        %v1178 = vpop.f32.mrb[0].mxu0
        %1179 = vmatprep.mubr.f32.mxu0 0.0
        %1180 = vmatmul.mubr.f32.gmra.mrb[0].mxu0 %v1054
        %v1181 = vpop.f32.mrb[0].mxu0
        %v1182 = vadd.f32 %v1030, %v1181
        %v1183 = vpop.f32.mrb[0].mxu0
        %1184 = vmatprep.mubr.f32.mxu0 0.0
        %1185 = vmatmul.mubr.f32.gmra.mrb[0].mxu0 %v1057
        %v1186 = vpop.f32.mrb[0].mxu0
        %v1187 = vadd.f32 %v1030, %v1186
        %v1188 = vpop.f32.mrb[0].mxu0
        %1189 = vmatprep.mubr.f32.mxu0 0.0
        %1190 = vmatmul.mubr.f32.gmra.mrb[0].mxu0 %v1060
        %v1191 = vpop.f32.mrb[0].mxu0
        %v1192 = vadd.f32 %v1030, %v1191
        %v1193 = vpop.f32.mrb[0].mxu0
        %1194 = vmatprep.mubr.f32.mxu0 0.0
        %1195 = vmatmul.mubr.f32.gmra.mrb[0].mxu0 %v1063
        %v1196 = vpop.f32.mrb[0].mxu0
        %v1197 = vadd.f32 %v1030, %v1196
        %v1198 = vpop.f32.mrb[0].mxu0
        %1199 = vmatprep.mubr.f32.mxu0 0.0
        %1200 = vmatmul.mubr.f32.gmra.mrb[0].mxu0 %v1066
        %v1201 = vpop.f32.mrb[0].mxu0
        %v1202 = vadd.f32 %v1030, %v1201
        %v1203 = vpop.f32.mrb[0].mxu0
        %1204 = vmatprep.mubr.f32.mxu0 0.0
        %1205 = vmatmul.mubr.f32.gmra.mrb[0].mxu0 %v1069
        %v1206 = vpop.f32.mrb[0].mxu0
        %v1207 = vadd.f32 %v1030, %v1206
        %v1208 = vpop.f32.mrb[0].mxu0
        %1209 = vmatprep.mubr.f32.mxu0 0.0
        %1210 = vmatmul.mubr.f32.gmra.mrb[0].mxu0 %v1072
        %v1211 = vpop.f32.mrb[0].mxu0
        %v1212 = vadd.f32 %v1030, %v1211
        %v1213 = vpop.f32.mrb[0].mxu0
        %1214 = vmatprep.mubr.f32.mxu0 0.0
        %1215 = vmatmul.mubr.f32.gmra.mrb[0].mxu0 %v1075
        %v1216 = vpop.f32.mrb[0].mxu0
        %v1217 = vadd.f32 %v1030, %v1216
        %v1218 = vpop.f32.mrb[0].mxu0
        %1219 = vmatprep.mubr.f32.mxu0 0.0
        %1220 = vmatmul.mubr.f32.gmra.mrb[0].mxu0 %v1078
        %v1221 = vpop.f32.mrb[0].mxu0
        %v1222 = vadd.f32 %v1030, %v1221
        %v1223 = vpop.f32.mrb[0].mxu0
        %1224 = vdwg.mxu0
        %v1225 = vld [vmem:[%s7] sm:$0xff]
        %v1226 = vld [vmem:[%s7 + $0x8] sm:$0xff]
        %v1227 = vld [vmem:[%s7 + $0x10] sm:$0xff]
        %v1228 = vld [vmem:[%s7 + $0x18] sm:$0xff]
        %v1229 = vld [vmem:[%s7 + $0x20] sm:$0xff]
        %v1230 = vld [vmem:[%s7 + $0x28] sm:$0xff]
        %v1231 = vld [vmem:[%s7 + $0x30] sm:$0xff]
        %v1232 = vld [vmem:[%s7 + $0x38] sm:$0xff]
        %v1233 = vld [vmem:[%s7 + $0x40] sm:$0xff]
        %v1234 = vld [vmem:[%s7 + $0x48] sm:$0xff]
        %v1235 = vld [vmem:[%s7 + $0x50] sm:$0xff]
        %v1236 = vld [vmem:[%s7 + $0x58] sm:$0xff]
        %v1237 = vld [vmem:[%s8] sm:$0x1]
        %v1239 = vlaneseq
        %v1240 = vshrl.u32 %v1239, 7
        %v1241 = vsub.s32 0, %v1240
        %v1242 = vrot.slane %v1237, %v1241
        %1244 = vmatprep.subr.mxu0 0.0
        %1245 = vmatpush1.msra.mxu0 %v1225
        %1246 = vmatprep.subr.mxu0 0.0
        %1247 = vmatpush1.msra.mxu0 %v1226
        %1248 = vmatprep.subr.mxu0 0.0
        %1249 = vmatpush1.msra.mxu0 %v1227
        %1250 = vmatprep.subr.mxu0 0.0
        %1251 = vmatpush1.msra.mxu0 %v1228
        %1252 = vmatprep.subr.mxu0 0.0
        %1253 = vmatpush1.msra.mxu0 %v1229
        %1254 = vmatprep.subr.mxu0 0.0
        %1255 = vmatpush1.msra.mxu0 %v1230
        %1256 = vmatprep.subr.mxu0 0.0
        %1257 = vmatpush1.msra.mxu0 %v1231
        %1258 = vmatprep.subr.mxu0 0.0
        %1259 = vmatpush1.msra.mxu0 %v1232
        %1260 = vmatprep.subr.mxu0 0.0
        %1261 = vmatpush1.msra.mxu0 %v1233
        %1262 = vmatprep.subr.mxu0 0.0
        %1263 = vmatpush1.msra.mxu0 %v1234
        %1264 = vmatprep.subr.mxu0 0.0
        %1265 = vmatpush1.msra.mxu0 %v1235
        %1266 = vmatprep.subr.mxu0 0.0
        %1267 = vmatpush1.msra.mxu0 %v1236
        %1268 = vmatprep.subr.mxu0 0.0
        %1269 = vmatpush1.msra.mxu0 0.0
        %1270 = vmatprep.subr.mxu0 0.0
        %1271 = vmatpush1.msra.mxu0 0.0
        %1272 = vmatprep.subr.mxu0 0.0
        %1273 = vmatpush1.msra.mxu0 0.0
        %1274 = vmatprep.subr.mxu0 0.0
        %1275 = vmatpush1.msra.mxu0 0.0
        %1276 = vmatprep.subr.mxu0 0.0
        %1277 = vmatpush1.msra.mxu0 0.0
        %1278 = vmatprep.subr.mxu0 0.0
        %1279 = vmatpush1.msra.mxu0 0.0
        %1280 = vmatprep.subr.mxu0 0.0
        %1281 = vmatpush1.msra.mxu0 0.0
        %1282 = vmatprep.subr.mxu0 0.0
        %1283 = vmatpush1.msra.mxu0 0.0
        %1284 = vmatprep.subr.mxu0 0.0
        %1285 = vmatpush1.msra.mxu0 0.0
        %1286 = vmatprep.subr.mxu0 0.0
        %1287 = vmatpush1.msra.mxu0 0.0
        %1288 = vmatprep.subr.mxu0 0.0
        %1289 = vmatpush1.msra.mxu0 0.0
        %1290 = vmatprep.subr.mxu0 0.0
        %1291 = vmatpush1.msra.mxu0 0.0
        %1292 = vmatprep.subr.mxu0 0.0
        %1293 = vmatpush1.msra.mxu0 0.0
        %1294 = vmatprep.subr.mxu0 0.0
        %1295 = vmatpush1.msra.mxu0 0.0
        %1296 = vmatprep.subr.mxu0 0.0
        %1297 = vmatpush1.msra.mxu0 0.0
        %1298 = vmatprep.subr.mxu0 0.0
        %1299 = vmatpush1.msra.mxu0 0.0
        %1300 = vmatprep.subr.mxu0 0.0
        %1301 = vmatpush1.msra.mxu0 0.0
        %1302 = vmatprep.subr.mxu0 0.0
        %1303 = vmatpush1.msra.mxu0 0.0
        %1304 = vmatprep.subr.mxu0 0.0
        %1305 = vmatpush1.msra.mxu0 0.0
        %1306 = vmatprep.subr.mxu0 0.0
        %1307 = vmatpush1.msra.mxu0 0.0
        %1308 = vmatprep.mubr.f32.mxu0 0.0
        %1309 = vmatmul.mubr.f32.gmra.mrb[0].mxu0 %v1033
        %v1310 = vpop.f32.mrb[0].mxu0
        %v1311 = vadd.f32 %v1242, %v1310
        %v1312 = vpop.f32.mrb[0].mxu0
        %1313 = vmatprep.mubr.f32.mxu0 0.0
        %1314 = vmatmul.mubr.f32.gmra.mrb[0].mxu0 %v1036
        %v1315 = vpop.f32.mrb[0].mxu0
        %v1316 = vadd.f32 %v1242, %v1315
        %v1317 = vpop.f32.mrb[0].mxu0
        %1318 = vmatprep.mubr.f32.mxu0 0.0
        %1319 = vmatmul.mubr.f32.gmra.mrb[0].mxu0 %v1039
        %v1320 = vpop.f32.mrb[0].mxu0
        %v1321 = vadd.f32 %v1242, %v1320
        %v1322 = vpop.f32.mrb[0].mxu0
        %1323 = vmatprep.mubr.f32.mxu0 0.0
        %1324 = vmatmul.mubr.f32.gmra.mrb[0].mxu0 %v1042
        %v1325 = vpop.f32.mrb[0].mxu0
        %v1326 = vadd.f32 %v1242, %v1325
        %v1327 = vpop.f32.mrb[0].mxu0
        %1328 = vmatprep.mubr.f32.mxu0 0.0
        %1329 = vmatmul.mubr.f32.gmra.mrb[0].mxu0 %v1045
        %v1330 = vpop.f32.mrb[0].mxu0
        %v1331 = vadd.f32 %v1242, %v1330
        %v1332 = vpop.f32.mrb[0].mxu0
        %1333 = vmatprep.mubr.f32.mxu0 0.0
        %1334 = vmatmul.mubr.f32.gmra.mrb[0].mxu0 %v1048
        %v1335 = vpop.f32.mrb[0].mxu0
        %v1336 = vadd.f32 %v1242, %v1335
        %v1337 = vpop.f32.mrb[0].mxu0
        %1338 = vmatprep.mubr.f32.mxu0 0.0
        %1339 = vmatmul.mubr.f32.gmra.mrb[0].mxu0 %v1051
        %v1340 = vpop.f32.mrb[0].mxu0
        %v1341 = vadd.f32 %v1242, %v1340
        %v1342 = vpop.f32.mrb[0].mxu0
        %1343 = vmatprep.mubr.f32.mxu0 0.0
        %1344 = vmatmul.mubr.f32.gmra.mrb[0].mxu0 %v1054
        %v1345 = vpop.f32.mrb[0].mxu0
        %v1346 = vadd.f32 %v1242, %v1345
        %v1347 = vpop.f32.mrb[0].mxu0
        %1348 = vmatprep.mubr.f32.mxu0 0.0
        %1349 = vmatmul.mubr.f32.gmra.mrb[0].mxu0 %v1057
        %v1350 = vpop.f32.mrb[0].mxu0
        %v1351 = vadd.f32 %v1242, %v1350
        %v1352 = vpop.f32.mrb[0].mxu0
        %1353 = vmatprep.mubr.f32.mxu0 0.0
        %1354 = vmatmul.mubr.f32.gmra.mrb[0].mxu0 %v1060
        %v1355 = vpop.f32.mrb[0].mxu0
        %v1356 = vadd.f32 %v1242, %v1355
        %v1357 = vpop.f32.mrb[0].mxu0
        %1358 = vmatprep.mubr.f32.mxu0 0.0
        %1359 = vmatmul.mubr.f32.gmra.mrb[0].mxu0 %v1063
        %v1360 = vpop.f32.mrb[0].mxu0
        %v1361 = vadd.f32 %v1242, %v1360
        %v1362 = vpop.f32.mrb[0].mxu0
        %1363 = vmatprep.mubr.f32.mxu0 0.0
        %1364 = vmatmul.mubr.f32.gmra.mrb[0].mxu0 %v1066
        %v1365 = vpop.f32.mrb[0].mxu0
        %v1366 = vadd.f32 %v1242, %v1365
        %v1367 = vpop.f32.mrb[0].mxu0
        %1368 = vmatprep.mubr.f32.mxu0 0.0
        %1369 = vmatmul.mubr.f32.gmra.mrb[0].mxu0 %v1069
        %v1370 = vpop.f32.mrb[0].mxu0
        %v1371 = vadd.f32 %v1242, %v1370
        %v1372 = vpop.f32.mrb[0].mxu0
        %1373 = vmatprep.mubr.f32.mxu0 0.0
        %1374 = vmatmul.mubr.f32.gmra.mrb[0].mxu0 %v1072
        %v1375 = vpop.f32.mrb[0].mxu0
        %v1376 = vadd.f32 %v1242, %v1375
        %v1377 = vpop.f32.mrb[0].mxu0
        %1378 = vmatprep.mubr.f32.mxu0 0.0
        %1379 = vmatmul.mubr.f32.gmra.mrb[0].mxu0 %v1075
        %v1380 = vpop.f32.mrb[0].mxu0
        %v1381 = vadd.f32 %v1242, %v1380
        %v1382 = vpop.f32.mrb[0].mxu0
        %1383 = vmatprep.mubr.f32.mxu0 0.0
        %1384 = vmatmul.mubr.f32.gmra.mrb[0].mxu0 %v1078
        %v1385 = vpop.f32.mrb[0].mxu0
        %v1386 = vadd.f32 %v1242, %v1385
        %v1387 = vpop.f32.mrb[0].mxu0
        %1388 = vdwg.mxu0
        %v1389 = vld [vmem:[%s9] sm:$0xff]
        %v1390 = vld [vmem:[%s9 + $0x8] sm:$0xff]
        %v1391 = vld [vmem:[%s9 + $0x10] sm:$0xff]
        %v1392 = vld [vmem:[%s9 + $0x18] sm:$0xff]
        %v1393 = vld [vmem:[%s9 + $0x20] sm:$0xff]
        %v1394 = vld [vmem:[%s9 + $0x28] sm:$0xff]
        %v1395 = vld [vmem:[%s9 + $0x30] sm:$0xff]
        %v1396 = vld [vmem:[%s9 + $0x38] sm:$0xff]
        %v1397 = vld [vmem:[%s9 + $0x40] sm:$0xff]
        %v1398 = vld [vmem:[%s9 + $0x48] sm:$0xff]
        %v1399 = vld [vmem:[%s9 + $0x50] sm:$0xff]
        %v1400 = vld [vmem:[%s9 + $0x58] sm:$0xff]
        %v1401 = vld [vmem:[%s10] sm:$0x1]
        %v1403 = vlaneseq
        %v1404 = vshrl.u32 %v1403, 7
        %v1405 = vsub.s32 0, %v1404
        %v1406 = vrot.slane %v1401, %v1405
        %1408 = vmatprep.subr.mxu0 0.0
        %1409 = vmatpush1.msra.mxu0 %v1389
        %1410 = vmatprep.subr.mxu0 0.0
        %1411 = vmatpush1.msra.mxu0 %v1390
        %1412 = vmatprep.subr.mxu0 0.0
        %1413 = vmatpush1.msra.mxu0 %v1391
        %1414 = vmatprep.subr.mxu0 0.0
        %1415 = vmatpush1.msra.mxu0 %v1392
        %1416 = vmatprep.subr.mxu0 0.0
        %1417 = vmatpush1.msra.mxu0 %v1393
        %1418 = vmatprep.subr.mxu0 0.0
        %1419 = vmatpush1.msra.mxu0 %v1394
        %1420 = vmatprep.subr.mxu0 0.0
        %1421 = vmatpush1.msra.mxu0 %v1395
        %1422 = vmatprep.subr.mxu0 0.0
        %1423 = vmatpush1.msra.mxu0 %v1396
        %1424 = vmatprep.subr.mxu0 0.0
        %1425 = vmatpush1.msra.mxu0 %v1397
        %1426 = vmatprep.subr.mxu0 0.0
        %1427 = vmatpush1.msra.mxu0 %v1398
        %1428 = vmatprep.subr.mxu0 0.0
        %1429 = vmatpush1.msra.mxu0 %v1399
        %1430 = vmatprep.subr.mxu0 0.0
        %1431 = vmatpush1.msra.mxu0 %v1400
        %1432 = vmatprep.subr.mxu0 0.0
        %1433 = vmatpush1.msra.mxu0 0.0
        %1434 = vmatprep.subr.mxu0 0.0
        %1435 = vmatpush1.msra.mxu0 0.0
        %1436 = vmatprep.subr.mxu0 0.0
        %1437 = vmatpush1.msra.mxu0 0.0
        %1438 = vmatprep.subr.mxu0 0.0
        %1439 = vmatpush1.msra.mxu0 0.0
        %1440 = vmatprep.subr.mxu0 0.0
        %1441 = vmatpush1.msra.mxu0 0.0
        %1442 = vmatprep.subr.mxu0 0.0
        %1443 = vmatpush1.msra.mxu0 0.0
        %1444 = vmatprep.subr.mxu0 0.0
        %1445 = vmatpush1.msra.mxu0 0.0
        %1446 = vmatprep.subr.mxu0 0.0
        %1447 = vmatpush1.msra.mxu0 0.0
        %1448 = vmatprep.subr.mxu0 0.0
        %1449 = vmatpush1.msra.mxu0 0.0
        %1450 = vmatprep.subr.mxu0 0.0
        %1451 = vmatpush1.msra.mxu0 0.0
        %1452 = vmatprep.subr.mxu0 0.0
        %1453 = vmatpush1.msra.mxu0 0.0
        %1454 = vmatprep.subr.mxu0 0.0
        %1455 = vmatpush1.msra.mxu0 0.0
        %1456 = vmatprep.subr.mxu0 0.0
        %1457 = vmatpush1.msra.mxu0 0.0
        %1458 = vmatprep.subr.mxu0 0.0
        %1459 = vmatpush1.msra.mxu0 0.0
        %1460 = vmatprep.subr.mxu0 0.0
        %1461 = vmatpush1.msra.mxu0 0.0
        %1462 = vmatprep.subr.mxu0 0.0
        %1463 = vmatpush1.msra.mxu0 0.0
        %1464 = vmatprep.subr.mxu0 0.0
        %1465 = vmatpush1.msra.mxu0 0.0
        %1466 = vmatprep.subr.mxu0 0.0
        %1467 = vmatpush1.msra.mxu0 0.0
        %1468 = vmatprep.subr.mxu0 0.0
        %1469 = vmatpush1.msra.mxu0 0.0
        %1470 = vmatprep.subr.mxu0 0.0
        %1471 = vmatpush1.msra.mxu0 0.0
        %1472 = vmatprep.mubr.f32.mxu0 0.0
        %1473 = vmatmul.mubr.f32.gmra.mrb[0].mxu0 %v1033
        %v1474 = vpop.f32.mrb[0].mxu0
        %v1475 = vadd.f32 %v1406, %v1474
        %v1476 = vpop.f32.mrb[0].mxu0
        %1477 = vmatprep.mubr.f32.mxu0 0.0
        %1478 = vmatmul.mubr.f32.gmra.mrb[0].mxu0 %v1036
        %v1479 = vpop.f32.mrb[0].mxu0
        %v1480 = vadd.f32 %v1406, %v1479
        %v1481 = vpop.f32.mrb[0].mxu0
        %1482 = vmatprep.mubr.f32.mxu0 0.0
        %1483 = vmatmul.mubr.f32.gmra.mrb[0].mxu0 %v1039
        %v1484 = vpop.f32.mrb[0].mxu0
        %v1485 = vadd.f32 %v1406, %v1484
        %v1486 = vpop.f32.mrb[0].mxu0
        %1487 = vmatprep.mubr.f32.mxu0 0.0
        %1488 = vmatmul.mubr.f32.gmra.mrb[0].mxu0 %v1042
        %v1489 = vpop.f32.mrb[0].mxu0
        %v1490 = vadd.f32 %v1406, %v1489
        %v1491 = vpop.f32.mrb[0].mxu0
        %1492 = vmatprep.mubr.f32.mxu0 0.0
        %1493 = vmatmul.mubr.f32.gmra.mrb[0].mxu0 %v1045
        %v1494 = vpop.f32.mrb[0].mxu0
        %v1495 = vadd.f32 %v1406, %v1494
        %v1496 = vpop.f32.mrb[0].mxu0
        %1497 = vmatprep.mubr.f32.mxu0 0.0
        %1498 = vmatmul.mubr.f32.gmra.mrb[0].mxu0 %v1048
        %v1499 = vpop.f32.mrb[0].mxu0
        %v1500 = vadd.f32 %v1406, %v1499
        %v1501 = vpop.f32.mrb[0].mxu0
        %1502 = vmatprep.mubr.f32.mxu0 0.0
        %1503 = vmatmul.mubr.f32.gmra.mrb[0].mxu0 %v1051
        %v1504 = vpop.f32.mrb[0].mxu0
        %v1505 = vadd.f32 %v1406, %v1504
        %v1506 = vpop.f32.mrb[0].mxu0
        %1507 = vmatprep.mubr.f32.mxu0 0.0
        %1508 = vmatmul.mubr.f32.gmra.mrb[0].mxu0 %v1054
        %v1509 = vpop.f32.mrb[0].mxu0
        %v1510 = vadd.f32 %v1406, %v1509
        %v1511 = vpop.f32.mrb[0].mxu0
        %1512 = vmatprep.mubr.f32.mxu0 0.0
        %1513 = vmatmul.mubr.f32.gmra.mrb[0].mxu0 %v1057
        %v1514 = vpop.f32.mrb[0].mxu0
        %v1515 = vadd.f32 %v1406, %v1514
        %v1516 = vpop.f32.mrb[0].mxu0
        %1517 = vmatprep.mubr.f32.mxu0 0.0
        %1518 = vmatmul.mubr.f32.gmra.mrb[0].mxu0 %v1060
        %v1519 = vpop.f32.mrb[0].mxu0
        %v1520 = vadd.f32 %v1406, %v1519
        %v1521 = vpop.f32.mrb[0].mxu0
        %1522 = vmatprep.mubr.f32.mxu0 0.0
        %1523 = vmatmul.mubr.f32.gmra.mrb[0].mxu0 %v1063
        %v1524 = vpop.f32.mrb[0].mxu0
        %v1525 = vadd.f32 %v1406, %v1524
        %v1526 = vpop.f32.mrb[0].mxu0
        %1527 = vmatprep.mubr.f32.mxu0 0.0
        %1528 = vmatmul.mubr.f32.gmra.mrb[0].mxu0 %v1066
        %v1529 = vpop.f32.mrb[0].mxu0
        %v1530 = vadd.f32 %v1406, %v1529
        %v1531 = vpop.f32.mrb[0].mxu0
        %1532 = vmatprep.mubr.f32.mxu0 0.0
        %1533 = vmatmul.mubr.f32.gmra.mrb[0].mxu0 %v1069
        %v1534 = vpop.f32.mrb[0].mxu0
        %v1535 = vadd.f32 %v1406, %v1534
        %v1536 = vpop.f32.mrb[0].mxu0
        %1537 = vmatprep.mubr.f32.mxu0 0.0
        %1538 = vmatmul.mubr.f32.gmra.mrb[0].mxu0 %v1072
        %v1539 = vpop.f32.mrb[0].mxu0
        %v1540 = vadd.f32 %v1406, %v1539
        %v1541 = vpop.f32.mrb[0].mxu0
        %1542 = vmatprep.mubr.f32.mxu0 0.0
        %1543 = vmatmul.mubr.f32.gmra.mrb[0].mxu0 %v1075
        %v1544 = vpop.f32.mrb[0].mxu0
        %v1545 = vadd.f32 %v1406, %v1544
        %v1546 = vpop.f32.mrb[0].mxu0
        %1547 = vmatprep.mubr.f32.mxu0 0.0
        %1548 = vmatmul.mubr.f32.gmra.mrb[0].mxu0 %v1078
        %v1549 = vpop.f32.mrb[0].mxu0
        %v1550 = vadd.f32 %v1406, %v1549
        %v1551 = vpop.f32.mrb[0].mxu0
        %1552 = vdwg.mxu0
        %v1553 = vmul.f32 %v1147, 1.442695
        %v1554 = vpow.pop %v1553
        %v1555 = vmul.f32 %v1152, 1.442695
        %v1556 = vpow.pop %v1555
        %v1557 = vmul.f32 %v1157, 1.442695
        %v1558 = vpow.pop %v1557
        %v1559 = vmul.f32 %v1162, 1.442695
        %v1560 = vpow.pop %v1559
        %v1561 = vmul.f32 %v1167, 1.442695
        %v1562 = vpow.pop %v1561
        %v1563 = vmul.f32 %v1172, 1.442695
        %v1564 = vpow.pop %v1563
        %v1565 = vmul.f32 %v1177, 1.442695
        %v1566 = vpow.pop %v1565
        %v1567 = vmul.f32 %v1182, 1.442695
        %v1568 = vpow.pop %v1567
        %v1569 = vmul.f32 %v1187, 1.442695
        %v1570 = vpow.pop %v1569
        %v1571 = vmul.f32 %v1192, 1.442695
        %v1572 = vpow.pop %v1571
        %v1573 = vmul.f32 %v1197, 1.442695
        %v1574 = vpow.pop %v1573
        %v1575 = vmul.f32 %v1202, 1.442695
        %v1576 = vpow.pop %v1575
        %v1577 = vmul.f32 %v1207, 1.442695
        %v1578 = vpow.pop %v1577
        %v1579 = vmul.f32 %v1212, 1.442695
        %v1580 = vpow.pop %v1579
        %v1581 = vmul.f32 %v1217, 1.442695
        %v1582 = vpow.pop %v1581
        %v1583 = vmul.f32 %v1222, 1.442695
        %v1584 = vpow.pop %v1583
        %v1585 = vxor.u32 %v1554, 2147483648
        %v1586 = vxor.u32 %v1556, 2147483648
        %v1587 = vxor.u32 %v1558, 2147483648
        %v1588 = vxor.u32 %v1560, 2147483648
        %v1589 = vxor.u32 %v1562, 2147483648
        %v1590 = vxor.u32 %v1564, 2147483648
        %v1591 = vxor.u32 %v1566, 2147483648
        %v1592 = vxor.u32 %v1568, 2147483648
        %v1593 = vxor.u32 %v1570, 2147483648
        %v1594 = vxor.u32 %v1572, 2147483648
        %v1595 = vxor.u32 %v1574, 2147483648
        %v1596 = vxor.u32 %v1576, 2147483648
        %v1597 = vxor.u32 %v1578, 2147483648
        %v1598 = vxor.u32 %v1580, 2147483648
        %v1599 = vxor.u32 %v1582, 2147483648
        %v1600 = vxor.u32 %v1584, 2147483648
        %v1601 = vmul.f32 %v1585, 1.442695
        %v1602 = vpow.pop %v1601
        %v1603 = vmul.f32 %v1586, 1.442695
        %v1604 = vpow.pop %v1603
        %v1605 = vmul.f32 %v1587, 1.442695
        %v1606 = vpow.pop %v1605
        %v1607 = vmul.f32 %v1588, 1.442695
        %v1608 = vpow.pop %v1607
        %v1609 = vmul.f32 %v1589, 1.442695
        %v1610 = vpow.pop %v1609
        %v1611 = vmul.f32 %v1590, 1.442695
        %v1612 = vpow.pop %v1611
        %v1613 = vmul.f32 %v1591, 1.442695
        %v1614 = vpow.pop %v1613
        %v1615 = vmul.f32 %v1592, 1.442695
        %v1616 = vpow.pop %v1615
        %v1617 = vmul.f32 %v1593, 1.442695
        %v1618 = vpow.pop %v1617
        %v1619 = vmul.f32 %v1594, 1.442695
        %v1620 = vpow.pop %v1619
        %v1621 = vmul.f32 %v1595, 1.442695
        %v1622 = vpow.pop %v1621
        %v1623 = vmul.f32 %v1596, 1.442695
        %v1624 = vpow.pop %v1623
        %v1625 = vmul.f32 %v1597, 1.442695
        %v1626 = vpow.pop %v1625
        %v1627 = vmul.f32 %v1598, 1.442695
        %v1628 = vpow.pop %v1627
        %v1629 = vmul.f32 %v1599, 1.442695
        %v1630 = vpow.pop %v1629
        %v1631 = vmul.f32 %v1600, 1.442695
        %v1632 = vpow.pop %v1631
        %v1633 = vadd.f32 %v1602, 1.0
        %v1634 = vadd.f32 %v1604, 1.0
        %v1635 = vadd.f32 %v1606, 1.0
        %v1636 = vadd.f32 %v1608, 1.0
        %v1637 = vadd.f32 %v1610, 1.0
        %v1638 = vadd.f32 %v1612, 1.0
        %v1639 = vadd.f32 %v1614, 1.0
        %v1640 = vadd.f32 %v1616, 1.0
        %v1641 = vadd.f32 %v1618, 1.0
        %v1642 = vadd.f32 %v1620, 1.0
        %v1643 = vadd.f32 %v1622, 1.0
        %v1644 = vadd.f32 %v1624, 1.0
        %v1645 = vadd.f32 %v1626, 1.0
        %v1646 = vadd.f32 %v1628, 1.0
        %v1647 = vadd.f32 %v1630, 1.0
        %v1648 = vadd.f32 %v1632, 1.0
        %v1649 = vrcp.pop %v1633
        %v1650 = vmul.f32 1.0, %v1649
        %v1651 = vrcp.pop %v1634
        %v1652 = vmul.f32 1.0, %v1651
        %v1653 = vrcp.pop %v1635
        %v1654 = vmul.f32 1.0, %v1653
        %v1655 = vrcp.pop %v1636
        %v1656 = vmul.f32 1.0, %v1655
        %v1657 = vrcp.pop %v1637
        %v1658 = vmul.f32 1.0, %v1657
        %v1659 = vrcp.pop %v1638
        %v1660 = vmul.f32 1.0, %v1659
        %v1661 = vrcp.pop %v1639
        %v1662 = vmul.f32 1.0, %v1661
        %v1663 = vrcp.pop %v1640
        %v1664 = vmul.f32 1.0, %v1663
        %v1665 = vrcp.pop %v1641
        %v1666 = vmul.f32 1.0, %v1665
        %v1667 = vrcp.pop %v1642
        %v1668 = vmul.f32 1.0, %v1667
        %v1669 = vrcp.pop %v1643
        %v1670 = vmul.f32 1.0, %v1669
        %v1671 = vrcp.pop %v1644
        %v1672 = vmul.f32 1.0, %v1671
        %v1673 = vrcp.pop %v1645
        %v1674 = vmul.f32 1.0, %v1673
        %v1675 = vrcp.pop %v1646
        %v1676 = vmul.f32 1.0, %v1675
        %v1677 = vrcp.pop %v1647
        %v1678 = vmul.f32 1.0, %v1677
        %v1679 = vrcp.pop %v1648
        %v1680 = vmul.f32 1.0, %v1679
        %v1681 = vmul.f32 %v1650, 10.0
        %v1682 = vmul.f32 %v1652, 10.0
        %v1683 = vmul.f32 %v1654, 10.0
        %v1684 = vmul.f32 %v1656, 10.0
        %v1685 = vmul.f32 %v1658, 10.0
        %v1686 = vmul.f32 %v1660, 10.0
        %v1687 = vmul.f32 %v1662, 10.0
        %v1688 = vmul.f32 %v1664, 10.0
        %v1689 = vmul.f32 %v1666, 10.0
        %v1690 = vmul.f32 %v1668, 10.0
        %v1691 = vmul.f32 %v1670, 10.0
        %v1692 = vmul.f32 %v1672, 10.0
        %v1693 = vmul.f32 %v1674, 10.0
        %v1694 = vmul.f32 %v1676, 10.0
        %v1695 = vmul.f32 %v1678, 10.0
        %v1696 = vmul.f32 %v1680, 10.0
        %v1697 = vmul.f32 %v1311, 1.442695
        %v1698 = vpow.pop %v1697
        %v1699 = vmul.f32 %v1316, 1.442695
        %v1700 = vpow.pop %v1699
        %v1701 = vmul.f32 %v1321, 1.442695
        %v1702 = vpow.pop %v1701
        %v1703 = vmul.f32 %v1326, 1.442695
        %v1704 = vpow.pop %v1703
        %v1705 = vmul.f32 %v1331, 1.442695
        %v1706 = vpow.pop %v1705
        %v1707 = vmul.f32 %v1336, 1.442695
        %v1708 = vpow.pop %v1707
        %v1709 = vmul.f32 %v1341, 1.442695
        %v1710 = vpow.pop %v1709
        %v1711 = vmul.f32 %v1346, 1.442695
        %v1712 = vpow.pop %v1711
        %v1713 = vmul.f32 %v1351, 1.442695
        %v1714 = vpow.pop %v1713
        %v1715 = vmul.f32 %v1356, 1.442695
        %v1716 = vpow.pop %v1715
        %v1717 = vmul.f32 %v1361, 1.442695
        %v1718 = vpow.pop %v1717
        %v1719 = vmul.f32 %v1366, 1.442695
        %v1720 = vpow.pop %v1719
        %v1721 = vmul.f32 %v1371, 1.442695
        %v1722 = vpow.pop %v1721
        %v1723 = vmul.f32 %v1376, 1.442695
        %v1724 = vpow.pop %v1723
        %v1725 = vmul.f32 %v1381, 1.442695
        %v1726 = vpow.pop %v1725
        %v1727 = vmul.f32 %v1386, 1.442695
        %v1728 = vpow.pop %v1727
        %v1729 = vxor.u32 %v1698, 2147483648
        %v1730 = vxor.u32 %v1700, 2147483648
        %v1731 = vxor.u32 %v1702, 2147483648
        %v1732 = vxor.u32 %v1704, 2147483648
        %v1733 = vxor.u32 %v1706, 2147483648
        %v1734 = vxor.u32 %v1708, 2147483648
        %v1735 = vxor.u32 %v1710, 2147483648
        %v1736 = vxor.u32 %v1712, 2147483648
        %v1737 = vxor.u32 %v1714, 2147483648
        %v1738 = vxor.u32 %v1716, 2147483648
        %v1739 = vxor.u32 %v1718, 2147483648
        %v1740 = vxor.u32 %v1720, 2147483648
        %v1741 = vxor.u32 %v1722, 2147483648
        %v1742 = vxor.u32 %v1724, 2147483648
        %v1743 = vxor.u32 %v1726, 2147483648
        %v1744 = vxor.u32 %v1728, 2147483648
        %v1745 = vmul.f32 %v1729, 1.442695
        %v1746 = vpow.pop %v1745
        %v1747 = vmul.f32 %v1730, 1.442695
        %v1748 = vpow.pop %v1747
        %v1749 = vmul.f32 %v1731, 1.442695
        %v1750 = vpow.pop %v1749
        %v1751 = vmul.f32 %v1732, 1.442695
        %v1752 = vpow.pop %v1751
        %v1753 = vmul.f32 %v1733, 1.442695
        %v1754 = vpow.pop %v1753
        %v1755 = vmul.f32 %v1734, 1.442695
        %v1756 = vpow.pop %v1755
        %v1757 = vmul.f32 %v1735, 1.442695
        %v1758 = vpow.pop %v1757
        %v1759 = vmul.f32 %v1736, 1.442695
        %v1760 = vpow.pop %v1759
        %v1761 = vmul.f32 %v1737, 1.442695
        %v1762 = vpow.pop %v1761
        %v1763 = vmul.f32 %v1738, 1.442695
        %v1764 = vpow.pop %v1763
        %v1765 = vmul.f32 %v1739, 1.442695
        %v1766 = vpow.pop %v1765
        %v1767 = vmul.f32 %v1740, 1.442695
        %v1768 = vpow.pop %v1767
        %v1769 = vmul.f32 %v1741, 1.442695
        %v1770 = vpow.pop %v1769
        %v1771 = vmul.f32 %v1742, 1.442695
        %v1772 = vpow.pop %v1771
        %v1773 = vmul.f32 %v1743, 1.442695
        %v1774 = vpow.pop %v1773
        %v1775 = vmul.f32 %v1744, 1.442695
        %v1776 = vpow.pop %v1775
        %v1777 = vadd.f32 %v1746, 1.0
        %v1778 = vadd.f32 %v1748, 1.0
        %v1779 = vadd.f32 %v1750, 1.0
        %v1780 = vadd.f32 %v1752, 1.0
        %v1781 = vadd.f32 %v1754, 1.0
        %v1782 = vadd.f32 %v1756, 1.0
        %v1783 = vadd.f32 %v1758, 1.0
        %v1784 = vadd.f32 %v1760, 1.0
        %v1785 = vadd.f32 %v1762, 1.0
        %v1786 = vadd.f32 %v1764, 1.0
        %v1787 = vadd.f32 %v1766, 1.0
        %v1788 = vadd.f32 %v1768, 1.0
        %v1789 = vadd.f32 %v1770, 1.0
        %v1790 = vadd.f32 %v1772, 1.0
        %v1791 = vadd.f32 %v1774, 1.0
        %v1792 = vadd.f32 %v1776, 1.0
        %v1793 = vrcp.pop %v1777
        %v1794 = vmul.f32 1.0, %v1793
        %v1795 = vrcp.pop %v1778
        %v1796 = vmul.f32 1.0, %v1795
        %v1797 = vrcp.pop %v1779
        %v1798 = vmul.f32 1.0, %v1797
        %v1799 = vrcp.pop %v1780
        %v1800 = vmul.f32 1.0, %v1799
        %v1801 = vrcp.pop %v1781
        %v1802 = vmul.f32 1.0, %v1801
        %v1803 = vrcp.pop %v1782
        %v1804 = vmul.f32 1.0, %v1803
        %v1805 = vrcp.pop %v1783
        %v1806 = vmul.f32 1.0, %v1805
        %v1807 = vrcp.pop %v1784
        %v1808 = vmul.f32 1.0, %v1807
        %v1809 = vrcp.pop %v1785
        %v1810 = vmul.f32 1.0, %v1809
        %v1811 = vrcp.pop %v1786
        %v1812 = vmul.f32 1.0, %v1811
        %v1813 = vrcp.pop %v1787
        %v1814 = vmul.f32 1.0, %v1813
        %v1815 = vrcp.pop %v1788
        %v1816 = vmul.f32 1.0, %v1815
        %v1817 = vrcp.pop %v1789
        %v1818 = vmul.f32 1.0, %v1817
        %v1819 = vrcp.pop %v1790
        %v1820 = vmul.f32 1.0, %v1819
        %v1821 = vrcp.pop %v1791
        %v1822 = vmul.f32 1.0, %v1821
        %v1823 = vrcp.pop %v1792
        %v1824 = vmul.f32 1.0, %v1823
        %v1825 = vmul.f32 %v1794, 10.0
        %v1826 = vmul.f32 %v1796, 10.0
        %v1827 = vmul.f32 %v1798, 10.0
        %v1828 = vmul.f32 %v1800, 10.0
        %v1829 = vmul.f32 %v1802, 10.0
        %v1830 = vmul.f32 %v1804, 10.0
        %v1831 = vmul.f32 %v1806, 10.0
        %v1832 = vmul.f32 %v1808, 10.0
        %v1833 = vmul.f32 %v1810, 10.0
        %v1834 = vmul.f32 %v1812, 10.0
        %v1835 = vmul.f32 %v1814, 10.0
        %v1836 = vmul.f32 %v1816, 10.0
        %v1837 = vmul.f32 %v1818, 10.0
        %v1838 = vmul.f32 %v1820, 10.0
        %v1839 = vmul.f32 %v1822, 10.0
        %v1840 = vmul.f32 %v1824, 10.0
        %1841 = vset.pattern.permute.xlu0 0
        %1842 = vperm.xlu0 %1841, %v386
        %v1843 = vpop.permute.xlu0 %1842
        %1845 = vset.pattern.permute.xlu0 0
        %1846 = vperm.xlu0 %1845, %v387
        %v1847 = vpop.permute.xlu0 %1846
        %1849 = vset.pattern.permute.xlu0 0
        %1850 = vperm.xlu0 %1849, %v388
        %v1851 = vpop.permute.xlu0 %1850
        %1853 = vset.pattern.permute.xlu0 0
        %1854 = vperm.xlu0 %1853, %v389
        %v1855 = vpop.permute.xlu0 %1854
        %1857 = vset.pattern.permute.xlu0 0
        %1858 = vperm.xlu0 %1857, %v390
        %v1859 = vpop.permute.xlu0 %1858
        %1861 = vset.pattern.permute.xlu0 0
        %1862 = vperm.xlu0 %1861, %v391
        %v1863 = vpop.permute.xlu0 %1862
        %1865 = vset.pattern.permute.xlu0 0
        %1866 = vperm.xlu0 %1865, %v392
        %v1867 = vpop.permute.xlu0 %1866
        %1869 = vset.pattern.permute.xlu0 0
        %1870 = vperm.xlu0 %1869, %v393
        %v1871 = vpop.permute.xlu0 %1870
        %1873 = vset.pattern.permute.xlu0 0
        %1874 = vperm.xlu0 %1873, %v394
        %v1875 = vpop.permute.xlu0 %1874
        %1877 = vset.pattern.permute.xlu0 0
        %1878 = vperm.xlu0 %1877, %v395
        %v1879 = vpop.permute.xlu0 %1878
        %1881 = vset.pattern.permute.xlu0 0
        %1882 = vperm.xlu0 %1881, %v396
        %v1883 = vpop.permute.xlu0 %1882
        %1885 = vset.pattern.permute.xlu0 0
        %1886 = vperm.xlu0 %1885, %v397
        %v1887 = vpop.permute.xlu0 %1886
        %1889 = vset.pattern.permute.xlu0 0
        %1890 = vperm.xlu0 %1889, %v398
        %v1891 = vpop.permute.xlu0 %1890
        %1893 = vset.pattern.permute.xlu0 0
        %1894 = vperm.xlu0 %1893, %v399
        %v1895 = vpop.permute.xlu0 %1894
        %1897 = vset.pattern.permute.xlu0 0
        %1898 = vperm.xlu0 %1897, %v400
        %v1899 = vpop.permute.xlu0 %1898
        %1901 = vset.pattern.permute.xlu0 0
        %1902 = vperm.xlu0 %1901, %v401
        %v1903 = vpop.permute.xlu0 %1902
        %v1905 = vmul.f32 %v1825, %v1843
        %v1906 = vmul.f32 %v1826, %v1847
        %v1907 = vmul.f32 %v1827, %v1851
        %v1908 = vmul.f32 %v1828, %v1855
        %v1909 = vmul.f32 %v1829, %v1859
        %v1910 = vmul.f32 %v1830, %v1863
        %v1911 = vmul.f32 %v1831, %v1867
        %v1912 = vmul.f32 %v1832, %v1871
        %v1913 = vmul.f32 %v1833, %v1875
        %v1914 = vmul.f32 %v1834, %v1879
        %v1915 = vmul.f32 %v1835, %v1883
        %v1916 = vmul.f32 %v1836, %v1887
        %v1917 = vmul.f32 %v1837, %v1891
        %v1918 = vmul.f32 %v1838, %v1895
        %v1919 = vmul.f32 %v1839, %v1899
        %v1920 = vmul.f32 %v1840, %v1903
        %v1921 = vadd.f32 %v1905, %v1475
        %v1922 = vadd.f32 %v1906, %v1480
        %v1923 = vadd.f32 %v1907, %v1485
        %v1924 = vadd.f32 %v1908, %v1490
        %v1925 = vadd.f32 %v1909, %v1495
        %v1926 = vadd.f32 %v1910, %v1500
        %v1927 = vadd.f32 %v1911, %v1505
        %v1928 = vadd.f32 %v1912, %v1510
        %v1929 = vadd.f32 %v1913, %v1515
        %v1930 = vadd.f32 %v1914, %v1520
        %v1931 = vadd.f32 %v1915, %v1525
        %v1932 = vadd.f32 %v1916, %v1530
        %v1933 = vadd.f32 %v1917, %v1535
        %v1934 = vadd.f32 %v1918, %v1540
        %v1935 = vadd.f32 %v1919, %v1545
        %v1936 = vadd.f32 %v1920, %v1550
        %v1937 = vtanh.pop %v1921
        %v1938 = vtanh.pop %v1922
        %v1939 = vtanh.pop %v1923
        %v1940 = vtanh.pop %v1924
        %v1941 = vtanh.pop %v1925
        %v1942 = vtanh.pop %v1926
        %v1943 = vtanh.pop %v1927
        %v1944 = vtanh.pop %v1928
        %v1945 = vtanh.pop %v1929
        %v1946 = vtanh.pop %v1930
        %v1947 = vtanh.pop %v1931
        %v1948 = vtanh.pop %v1932
        %v1949 = vtanh.pop %v1933
        %v1950 = vtanh.pop %v1934
        %v1951 = vtanh.pop %v1935
        %v1952 = vtanh.pop %v1936
        %v1953 = vtanh.pop %v1475
        %v1954 = vtanh.pop %v1480
        %v1955 = vtanh.pop %v1485
        %v1956 = vtanh.pop %v1490
        %v1957 = vtanh.pop %v1495
        %v1958 = vtanh.pop %v1500
        %v1959 = vtanh.pop %v1505
        %v1960 = vtanh.pop %v1510
        %v1961 = vtanh.pop %v1515
        %v1962 = vtanh.pop %v1520
        %v1963 = vtanh.pop %v1525
        %v1964 = vtanh.pop %v1530
        %v1965 = vtanh.pop %v1535
        %v1966 = vtanh.pop %v1540
        %v1967 = vtanh.pop %v1545
        %v1968 = vtanh.pop %v1550
        %v1969 = vsub.f32 %v1937, %v1953
        %v1970 = vsub.f32 %v1938, %v1954
        %v1971 = vsub.f32 %v1939, %v1955
        %v1972 = vsub.f32 %v1940, %v1956
        %v1973 = vsub.f32 %v1941, %v1957
        %v1974 = vsub.f32 %v1942, %v1958
        %v1975 = vsub.f32 %v1943, %v1959
        %v1976 = vsub.f32 %v1944, %v1960
        %v1977 = vsub.f32 %v1945, %v1961
        %v1978 = vsub.f32 %v1946, %v1962
        %v1979 = vsub.f32 %v1947, %v1963
        %v1980 = vsub.f32 %v1948, %v1964
        %v1981 = vsub.f32 %v1949, %v1965
        %v1982 = vsub.f32 %v1950, %v1966
        %v1983 = vsub.f32 %v1951, %v1967
        %v1984 = vsub.f32 %v1952, %v1968
        %v1985 = vmul.f32 %v1681, %v1969
        %v1986 = vmul.f32 %v1682, %v1970
        %v1987 = vmul.f32 %v1683, %v1971
        %v1988 = vmul.f32 %v1684, %v1972
        %v1989 = vmul.f32 %v1685, %v1973
        %v1990 = vmul.f32 %v1686, %v1974
        %v1991 = vmul.f32 %v1687, %v1975
        %v1992 = vmul.f32 %v1688, %v1976
        %v1993 = vmul.f32 %v1689, %v1977
        %v1994 = vmul.f32 %v1690, %v1978
        %v1995 = vmul.f32 %v1691, %v1979
        %v1996 = vmul.f32 %v1692, %v1980
        %v1997 = vmul.f32 %v1693, %v1981
        %v1998 = vmul.f32 %v1694, %v1982
        %v1999 = vmul.f32 %v1695, %v1983
        %v2000 = vmul.f32 %v1696, %v1984
        %vm2001 = vcmask 64512
        %v2003 = vsel %vm2001, 1.0, 0
        %v2006 = vsel %vm2001, %v1985, 0
        %v2009 = vsel %vm2001, %v1986, 0
        %v2012 = vsel %vm2001, %v1987, 0
        %v2015 = vsel %vm2001, %v1988, 0
        %v2018 = vsel %vm2001, %v1989, 0
        %v2021 = vsel %vm2001, %v1990, 0
        %v2024 = vsel %vm2001, %v1991, 0
        %v2027 = vsel %vm2001, %v1992, 0
        %v2030 = vsel %vm2001, %v1993, 0
        %v2033 = vsel %vm2001, %v1994, 0
        %v2036 = vsel %vm2001, %v1995, 0
        %v2039 = vsel %vm2001, %v1996, 0
        %v2042 = vsel %vm2001, %v1997, 0
        %v2045 = vsel %vm2001, %v1998, 0
        %v2048 = vsel %vm2001, %v1999, 0
        %v2051 = vsel %vm2001, %v2000, 0
        %2053 = vmatprep.subr.mxu0 0.0
        %2054 = vmatpush1.xpose.msra.mxu0 %v2006
        %2055 = vmatprep.subr.mxu0 0.0
        %2056 = vmatpush1.xpose.msra.mxu0 %v2009
        %2057 = vmatprep.subr.mxu0 0.0
        %2058 = vmatpush1.xpose.msra.mxu0 %v2012
        %2059 = vmatprep.subr.mxu0 0.0
        %2060 = vmatpush1.xpose.msra.mxu0 %v2015
        %2061 = vmatprep.subr.mxu0 0.0
        %2062 = vmatpush1.xpose.msra.mxu0 %v2018
        %2063 = vmatprep.subr.mxu0 0.0
        %2064 = vmatpush1.xpose.msra.mxu0 %v2021
        %2065 = vmatprep.subr.mxu0 0.0
        %2066 = vmatpush1.xpose.msra.mxu0 %v2024
        %2067 = vmatprep.subr.mxu0 0.0
        %2068 = vmatpush1.xpose.msra.mxu0 %v2027
        %2069 = vmatprep.subr.mxu0 0.0
        %2070 = vmatpush1.xpose.msra.mxu0 %v2030
        %2071 = vmatprep.subr.mxu0 0.0
        %2072 = vmatpush1.xpose.msra.mxu0 %v2033
        %2073 = vmatprep.subr.mxu0 0.0
        %2074 = vmatpush1.xpose.msra.mxu0 %v2036
        %2075 = vmatprep.subr.mxu0 0.0
        %2076 = vmatpush1.xpose.msra.mxu0 %v2039
        %2077 = vmatprep.subr.mxu0 0.0
        %2078 = vmatpush1.xpose.msra.mxu0 %v2042
        %2079 = vmatprep.subr.mxu0 0.0
        %2080 = vmatpush1.xpose.msra.mxu0 %v2045
        %2081 = vmatprep.subr.mxu0 0.0
        %2082 = vmatpush1.xpose.msra.mxu0 %v2048
        %2083 = vmatprep.subr.mxu0 0.0
        %2084 = vmatpush1.xpose.msra.mxu0 %v2051
        %2085 = vmatprep.subr.mxu0 0.0
        %2086 = vmatpush1.xpose.msra.mxu0 0.0
        %2087 = vmatprep.subr.mxu0 0.0
        %2088 = vmatpush1.xpose.msra.mxu0 0.0
        %2089 = vmatprep.subr.mxu0 0.0
        %2090 = vmatpush1.xpose.msra.mxu0 0.0
        %2091 = vmatprep.subr.mxu0 0.0
        %2092 = vmatpush1.xpose.msra.mxu0 0.0
        %2093 = vmatprep.subr.mxu0 0.0
        %2094 = vmatpush1.xpose.msra.mxu0 0.0
        %2095 = vmatprep.subr.mxu0 0.0
        %2096 = vmatpush1.xpose.msra.mxu0 0.0
        %2097 = vmatprep.subr.mxu0 0.0
        %2098 = vmatpush1.xpose.msra.mxu0 0.0
        %2099 = vmatprep.subr.mxu0 0.0
        %2100 = vmatpush1.xpose.msra.mxu0 0.0
        %2101 = vmatprep.subr.mxu0 0.0
        %2102 = vmatpush1.xpose.msra.mxu0 0.0
        %2103 = vmatprep.subr.mxu0 0.0
        %2104 = vmatpush1.xpose.msra.mxu0 0.0
        %2105 = vmatprep.subr.mxu0 0.0
        %2106 = vmatpush1.xpose.msra.mxu0 0.0
        %2107 = vmatprep.subr.mxu0 0.0
        %2108 = vmatpush1.xpose.msra.mxu0 0.0
        %2109 = vmatprep.subr.mxu0 0.0
        %2110 = vmatpush1.xpose.msra.mxu0 0.0
        %2111 = vmatprep.subr.mxu0 0.0
        %2112 = vmatpush1.xpose.msra.mxu0 0.0
        %2113 = vmatprep.subr.mxu0 0.0
        %2114 = vmatpush1.xpose.msra.mxu0 0.0
        %2115 = vmatprep.subr.mxu0 0.0
        %2116 = vmatpush1.xpose.msra.mxu0 0.0
        %2117 = vmatprep.mubr.f32.mxu0 0.0
        %2118 = vmatmul.mubr.f32.gmra.mrb[0].mxu0 %v2003
        %v2119 = vpop.f32.mrb[0].mxu0
        %v2120 = vadd.f32 0.0, %v2119
        %v2121 = vpop.f32.mrb[0].mxu0
        %2122 = vdwg.mxu0
        %2123 = vst [vmem:[%s379] sm:$0x1] %v2120
        %s2124 = sand.u32 %s269, 1
        %s2125 = scalar_lea.sflag [#allocation3], %s2124
        %s2126 = sand.u32 %s269, 1
        %s2127 = scalar_lea.vmem [#allocation2], %s2126
        // Predicated region
        $region65: #{tpu_custom_call.1} parent=63 // pred_check
          %p2128 = pneg %p279
        $region66: #{tpu_custom_call.1} parent=63 // pred_check_branch
          %2130 = sbr.rel (%p2128) target = $region68
        $region67: #{tpu_custom_call.1} parent=63 // pred_region
          %s2132 = ssub.s32 16, 16
          %2133 = vsyncadd %s2125, %s2132
          %s2134 = smul.addr %s25, 16
          %s2135 = scalar_lea.hbm %s11, %s2134
          %s2137 = sshll.u32 %s2127, 4
          %s2138 = int_to_ptr.vmem [resolvable:$true] %s2137
          %2140 = dma.vmem_to_hbm [thread:$0]  %s2138, 16, %s2135, %s2125
        $region68: #{tpu_custom_call.1} parent=63 // pred_fallthru
          _
      $region64: #{tpu_custom_call.1} parent=5 // pred_fallthru
        _
      %p2141 = scmp.le.s32.totalorder 2, %s20
      // Predicated region
      $region69: #{tpu_custom_call.1} parent=5 // pred_check
        %p2142 = pneg %p2141
      $region70: #{tpu_custom_call.1} parent=5 // pred_check_branch
        %2144 = sbr.rel (%p2142) target = $region72
      $region71: #{tpu_custom_call.1} parent=5 // pred_region
        %s2145 = ssub.s32 %s20, 2
        // Predicated region
        $region73: #{tpu_custom_call.1} parent=71 // pred_check
          %p2146 = pneg %p285
        $region74: #{tpu_custom_call.1} parent=71 // pred_check_branch
          %2148 = sbr.rel (%p2146) target = $region76
        $region75: #{tpu_custom_call.1} parent=71 // pred_region
          %s2149 = sand.u32 %s270, 1
          %s2150 = scalar_lea.sflag [#allocation3], %s2149
          %s2151 = sand.u32 %s270, 1
          %s2152 = scalar_lea.vmem [#allocation2], %s2151
          %2153 = dma.done %s2150, 16
        $region76: #{tpu_custom_call.1} parent=71 // pred_fallthru
          _
      $region72: #{tpu_custom_call.1} parent=5 // pred_fallthru
        _
    $region6: #{tpu_custom_call.1} parent=1 // loop_footer
      %s24 = sadd.s32 1, %s20
    $region7: #{tpu_custom_call.1} parent=1 // loop_footer_branch
      %19 = sbr.rel target = $region3
    $region8: #{tpu_custom_call.1} parent=1 // loop_exit
      _
    %2154 = vsyncpa [#allocation3], 1
    %s2155 = scalar_lea.sflag [#allocation3], 1
    %2156 = vsyncpa %s2155, 1

</llo_original>
